<compile_context>
chip_gen: v6e
topology: v6e:2x2x1
jax: 0.10.0
libtpu: 0.0.40
codegen_flags: <defaults>
</compile_context>

<pallas_src>
import jax
import jax.numpy as jnp
from jax import lax
from jax.experimental import pallas as pl
from jax.experimental.pallas import tpu as pltpu


def _make_corr_kernel(Bt, C, H, W, Cout, kh, kw):
    OH, OW = H - kh + 1, W - kw + 1
    K = C * kh * kw          # im2col contraction dimension
    N = OH * OW              # lane-dense output dimension

    def kernel(x_ref, w_ref, o_ref, p_ref):
        # x_ref: (Bt, C, H, W)   input tile (NCHW)
        # w_ref: (Bt, Cout, K)   weights flattened (dy, dx, c)-major (matches patch rows)
        # o_ref: (Bt, Cout, N)   lane-dense output slab
        # p_ref: (K, N)          im2col scratch in VMEM, reused across batch rows
        def body(b, carry):
            xb = x_ref[b]                                        # (C, H, W)
            # Assemble the im2col patch matrix: one strided copy per window tap.
            for dy in range(kh):
                for dx in range(kw):
                    tap = dy * kw + dx
                    p_ref[tap * C:(tap + 1) * C, :] = (
                        xb[:, dy:dy + OH, dx:dx + OW].reshape(C, N))
            # Single MXU matmul per batch row, fp32 accumulation.
            o_ref[b] = jnp.dot(
                w_ref[b], p_ref[...],
                preferred_element_type=jnp.float32).astype(o_ref.dtype)
            return carry

        lax.fori_loop(0, Bt, body, 0, unroll=True)

    return kernel


def correlation(x, kernel, *, batch_tile=None):
    """Pallas equivalent of Correlation().forward(x, kernel) (padding=0, groups=1)."""
    B, C, H, W = x.shape
    Bk, Ck, kh, kw = kernel.shape
    assert Bk == B, "batch mismatch between x and kernel"
    assert Ck % C == 0, "kernel channels must be a multiple of x channels"
    assert kh <= H and kw <= W, "kernel window must fit inside the input"
    Cout = Ck // C
    OH, OW = H - kh + 1, W - kw + 1
    K = C * kh * kw
    N = OH * OW

    # Batch tile: amortize per-grid-step overhead, but keep >=2 grid steps when
    # possible so both v7x TensorCores are fed by the "parallel" axis.
    if batch_tile is None:
        batch_tile = max(1, min(4, B // 2))
    batch_tile = max(1, min(batch_tile, B))
    while B % batch_tile:
        batch_tile -= 1
    Bt = batch_tile
    grid = (B // Bt,)

    # Weight layout: exactly kernel[b].view(-1, C, kh, kw), then flattened lane-dense
    # as (B, Cout, kh*kw*C) with (dy, dx, c)-major row order to match the patch matrix.
    w = kernel.reshape(B, Cout, C, kh, kw)
    w = jnp.transpose(w, (0, 1, 3, 4, 2)).reshape(B, Cout, K)

    itemsize = jnp.dtype(x.dtype).itemsize
    cost = pl.CostEstimate(
        flops=2 * B * Cout * K * N,
        transcendentals=0,
        bytes_accessed=(x.size + w.size + B * Cout * N) * itemsize,
    )

    out_flat = pl.pallas_call(
        _make_corr_kernel(Bt, C, H, W, Cout, kh, kw),
        out_shape=jax.ShapeDtypeStruct((B, Cout, N), x.dtype),
        grid_spec=pltpu.PrefetchScalarGridSpec(
            num_scalar_prefetch=0,
            grid=grid,
            in_specs=[
                pl.BlockSpec((Bt, C, H, W), lambda b: (b, 0, 0, 0)),
                pl.BlockSpec((Bt, Cout, K), lambda b: (b, 0, 0)),
            ],
            out_specs=pl.BlockSpec((Bt, Cout, N), lambda b: (b, 0, 0)),
            scratch_shapes=[pltpu.VMEM((K, N), x.dtype)],
        ),
        compiler_params=pltpu.CompilerParams(
            dimension_semantics=("parallel",),
        ),
        cost_estimate=cost,
    )(x, w)

    # Final (cheap) reshape back to NCHW output outside the kernel keeps the
    # in-kernel store lane-dense.
    return out_flat.reshape(B, Cout, OH, OW)


def correlation_ref(x, kernel):
    """Pure-JAX reference (mirrors xcorr_slow)."""
    B, C, H, W = x.shape
    _, Ck, kh, kw = kernel.shape
    Cout = Ck // C
    OH, OW = H - kh + 1, W - kw + 1
    w = kernel.reshape(B, Cout, C, kh, kw)
    out = jnp.zeros((B, Cout, OH, OW), dtype=jnp.float32)
    for dy in range(kh):
        for dx in range(kw):
            out = out + jnp.einsum(
                'boc,bcyx->boyx',
                w[:, :, :, dy, dx].astype(jnp.float32),
                x[:, :, dy:dy + OH, dx:dx + OW].astype(jnp.float32),
            )
    return out.astype(x.dtype)


if __name__ == "__main__":
    key = jax.random.PRNGKey(0)
    kx, kk = jax.random.split(key)

    B, C, H, W = 2, 4, 16, 16
    Cout, kh, kw = 2, 3, 3   # kernel channels = Cout * C

    x = jax.random.normal(kx, (B, C, H, W), dtype=jnp.float32)
    kernel = jax.random.normal(kk, (B, Cout * C, kh, kw), dtype=jnp.float32)

    out = correlation(x, kernel)
    out = jax.block_until_ready(out)

    ref = correlation_ref(x, kernel)
    assert out.shape == (B, Cout, H - kh + 1, W - kw + 1), out.shape
    assert jnp.allclose(out, ref, atol=1e-4, rtol=1e-4), "mismatch vs reference"

    print("KERNEL_OK")
</pallas_src>

<mosaic_0001>
module attributes {stable_mosaic.version = 11 : i64} {
  func.func @kernel(%arg0: i32, %arg1: memref<1x4x16x16xf32, #tpu.memory_space<vmem>>, %arg2: memref<1x2x36xf32, #tpu.memory_space<vmem>>, %arg3: memref<1x2x196xf32, #tpu.memory_space<vmem>>, %arg4: memref<36x196xf32, #tpu.memory_space<vmem>>) attributes {dimension_semantics = [#tpu.dimension_semantics<parallel>], iteration_bounds = array<i64: 2>, scalar_prefetch = 0 : i64, scratch_operands = 1 : i64, tpu.core_type = #tpu.core_type<tc>, window_params = [{transform_indices = @transform_0, window_bounds = array<i64: 1, 4, 16, 16>}, {transform_indices = @transform_1, window_bounds = array<i64: 1, 2, 36>}, {transform_indices = @transform_2, window_bounds = array<i64: 1, 2, 196>}]} {
    %c0_i32 = arith.constant 0 : i32
    %0 = arith.index_cast %c0_i32 : i32 to index
    %c0 = arith.constant 0 : index
    %c0_0 = arith.constant 0 : index
    %c0_1 = arith.constant 0 : index
    %1 = vector.load %arg1[%0, %c0, %c0_0, %c0_1] : memref<1x4x16x16xf32, #tpu.memory_space<vmem>>, vector<1x4x16x16xf32>
    %2 = vector.shape_cast %1 : vector<1x4x16x16xf32> to vector<4x16x16xf32>
    %3 = vector.extract_strided_slice %2 {offsets = [0, 0, 0], sizes = [4, 14, 14], strides = [1, 1, 1]} : vector<4x16x16xf32> to vector<4x14x14xf32>
    %4 = vector.shape_cast %3 : vector<4x14x14xf32> to vector<4x196xf32>
    %c0_2 = arith.constant 0 : index
    %c0_3 = arith.constant 0 : index
    %5 = vector.load %arg4[%c0_2, %c0_3] : memref<36x196xf32, #tpu.memory_space<vmem>>, vector<4x196xf32>
    tpu.vector_store %arg4[%c0_2, %c0_3], %4 {strides = array<i32>} : memref<36x196xf32, #tpu.memory_space<vmem>>, vector<4x196xf32>,
    %6 = vector.extract_strided_slice %2 {offsets = [0, 0, 1], sizes = [4, 14, 14], strides = [1, 1, 1]} : vector<4x16x16xf32> to vector<4x14x14xf32>
    %7 = vector.shape_cast %6 : vector<4x14x14xf32> to vector<4x196xf32>
    %c4 = arith.constant 4 : index
    %c0_4 = arith.constant 0 : index
    %8 = vector.load %arg4[%c4, %c0_4] : memref<36x196xf32, #tpu.memory_space<vmem>>, vector<4x196xf32>
    tpu.vector_store %arg4[%c4, %c0_4], %7 {strides = array<i32>} : memref<36x196xf32, #tpu.memory_space<vmem>>, vector<4x196xf32>,
    %9 = vector.extract_strided_slice %2 {offsets = [0, 0, 2], sizes = [4, 14, 14], strides = [1, 1, 1]} : vector<4x16x16xf32> to vector<4x14x14xf32>
    %10 = vector.shape_cast %9 : vector<4x14x14xf32> to vector<4x196xf32>
    %c8 = arith.constant 8 : index
    %c0_5 = arith.constant 0 : index
    %11 = vector.load %arg4[%c8, %c0_5] : memref<36x196xf32, #tpu.memory_space<vmem>>, vector<4x196xf32>
    tpu.vector_store %arg4[%c8, %c0_5], %10 {strides = array<i32>} : memref<36x196xf32, #tpu.memory_space<vmem>>, vector<4x196xf32>,
    %12 = vector.extract_strided_slice %2 {offsets = [0, 1, 0], sizes = [4, 14, 14], strides = [1, 1, 1]} : vector<4x16x16xf32> to vector<4x14x14xf32>
    %13 = vector.shape_cast %12 : vector<4x14x14xf32> to vector<4x196xf32>
    %c12 = arith.constant 12 : index
    %c0_6 = arith.constant 0 : index
    %14 = vector.load %arg4[%c12, %c0_6] : memref<36x196xf32, #tpu.memory_space<vmem>>, vector<4x196xf32>
    tpu.vector_store %arg4[%c12, %c0_6], %13 {strides = array<i32>} : memref<36x196xf32, #tpu.memory_space<vmem>>, vector<4x196xf32>,
    %15 = vector.extract_strided_slice %2 {offsets = [0, 1, 1], sizes = [4, 14, 14], strides = [1, 1, 1]} : vector<4x16x16xf32> to vector<4x14x14xf32>
    %16 = vector.shape_cast %15 : vector<4x14x14xf32> to vector<4x196xf32>
    %c16 = arith.constant 16 : index
    %c0_7 = arith.constant 0 : index
    %17 = vector.load %arg4[%c16, %c0_7] : memref<36x196xf32, #tpu.memory_space<vmem>>, vector<4x196xf32>
    tpu.vector_store %arg4[%c16, %c0_7], %16 {strides = array<i32>} : memref<36x196xf32, #tpu.memory_space<vmem>>, vector<4x196xf32>,
    %18 = vector.extract_strided_slice %2 {offsets = [0, 1, 2], sizes = [4, 14, 14], strides = [1, 1, 1]} : vector<4x16x16xf32> to vector<4x14x14xf32>
    %19 = vector.shape_cast %18 : vector<4x14x14xf32> to vector<4x196xf32>
    %c20 = arith.constant 20 : index
    %c0_8 = arith.constant 0 : index
    %20 = vector.load %arg4[%c20, %c0_8] : memref<36x196xf32, #tpu.memory_space<vmem>>, vector<4x196xf32>
    tpu.vector_store %arg4[%c20, %c0_8], %19 {strides = array<i32>} : memref<36x196xf32, #tpu.memory_space<vmem>>, vector<4x196xf32>,
    %21 = vector.extract_strided_slice %2 {offsets = [0, 2, 0], sizes = [4, 14, 14], strides = [1, 1, 1]} : vector<4x16x16xf32> to vector<4x14x14xf32>
    %22 = vector.shape_cast %21 : vector<4x14x14xf32> to vector<4x196xf32>
    %c24 = arith.constant 24 : index
    %c0_9 = arith.constant 0 : index
    %23 = vector.load %arg4[%c24, %c0_9] : memref<36x196xf32, #tpu.memory_space<vmem>>, vector<4x196xf32>
    tpu.vector_store %arg4[%c24, %c0_9], %22 {strides = array<i32>} : memref<36x196xf32, #tpu.memory_space<vmem>>, vector<4x196xf32>,
    %24 = vector.extract_strided_slice %2 {offsets = [0, 2, 1], sizes = [4, 14, 14], strides = [1, 1, 1]} : vector<4x16x16xf32> to vector<4x14x14xf32>
    %25 = vector.shape_cast %24 : vector<4x14x14xf32> to vector<4x196xf32>
    %c28 = arith.constant 28 : index
    %c0_10 = arith.constant 0 : index
    %26 = vector.load %arg4[%c28, %c0_10] : memref<36x196xf32, #tpu.memory_space<vmem>>, vector<4x196xf32>
    tpu.vector_store %arg4[%c28, %c0_10], %25 {strides = array<i32>} : memref<36x196xf32, #tpu.memory_space<vmem>>, vector<4x196xf32>,
    %27 = vector.extract_strided_slice %2 {offsets = [0, 2, 2], sizes = [4, 14, 14], strides = [1, 1, 1]} : vector<4x16x16xf32> to vector<4x14x14xf32>
    %28 = vector.shape_cast %27 : vector<4x14x14xf32> to vector<4x196xf32>
    %c32 = arith.constant 32 : index
    %c0_11 = arith.constant 0 : index
    %29 = vector.load %arg4[%c32, %c0_11] : memref<36x196xf32, #tpu.memory_space<vmem>>, vector<4x196xf32>
    tpu.vector_store %arg4[%c32, %c0_11], %28 {strides = array<i32>} : memref<36x196xf32, #tpu.memory_space<vmem>>, vector<4x196xf32>,
    %30 = arith.index_cast %c0_i32 : i32 to index
    %c0_12 = arith.constant 0 : index
    %c0_13 = arith.constant 0 : index
    %31 = vector.load %arg2[%30, %c0_12, %c0_13] : memref<1x2x36xf32, #tpu.memory_space<vmem>>, vector<1x2x36xf32>
    %32 = vector.shape_cast %31 : vector<1x2x36xf32> to vector<2x36xf32>
    %c0_14 = arith.constant 0 : index
    %c0_15 = arith.constant 0 : index
    %33 = vector.load %arg4[%c0_14, %c0_15] : memref<36x196xf32, #tpu.memory_space<vmem>>, vector<36x196xf32>
    %cst = arith.constant dense<0.000000e+00> : vector<2x196xf32>
    %34 = tpu.matmul %32, %33, %cst {dimension_numbers = #tpu.dot_dimension_numbers<[1], [0], [0], [1], [0, 0, 1, 1], [], []>} : vector<2x36xf32>, vector<36x196xf32>, vector<2x196xf32> -> vector<2x196xf32>
    %35 = arith.index_cast %c0_i32 : i32 to index
    %c0_16 = arith.constant 0 : index
    %c0_17 = arith.constant 0 : index
    %36 = vector.load %arg3[%35, %c0_16, %c0_17] : memref<1x2x196xf32, #tpu.memory_space<vmem>>, vector<1x2x196xf32>
    %37 = vector.shape_cast %36 : vector<1x2x196xf32> to vector<2x196xf32>
    %38 = vector.shape_cast %34 : vector<2x196xf32> to vector<1x2x196xf32>
    tpu.vector_store %arg3[%35, %c0_16, %c0_17], %38 {strides = array<i32>} : memref<1x2x196xf32, #tpu.memory_space<vmem>>, vector<1x2x196xf32>,
    %c1_i32 = arith.constant 1 : i32
    return
  }
  func.func @transform_0(%arg0: i32) -> (i32, i32, i32, i32) {
    %c0_i32 = arith.constant 0 : i32
    %c0_i32_0 = arith.constant 0 : i32
    %c0_i32_1 = arith.constant 0 : i32
    %c0_i32_2 = arith.constant 0 : i32
    return %arg0, %c0_i32, %c0_i32_0, %c0_i32_1 : i32, i32, i32, i32
  }
  func.func @transform_1(%arg0: i32) -> (i32, i32, i32) {
    %c0_i32 = arith.constant 0 : i32
    %c0_i32_0 = arith.constant 0 : i32
    %c0_i32_1 = arith.constant 0 : i32
    return %arg0, %c0_i32, %c0_i32_0 : i32, i32, i32
  }
  func.func @transform_2(%arg0: i32) -> (i32, i32, i32) {
    %c0_i32 = arith.constant 0 : i32
    %c0_i32_0 = arith.constant 0 : i32
    %c0_i32_1 = arith.constant 0 : i32
    return %arg0, %c0_i32, %c0_i32_0 : i32, i32, i32
  }
}

</mosaic_0001>

<llo_original>
// kernel: tpu_custom_call.1
$region0: #{tpu_custom_call.1}
  #allocation0 [shape = 'u32[]', space=smem, size = 0x4, offset = 0x4, fixed_abs, tag = 'smem constant byte address 0x4 - core index']
  #allocation1 [shape = 'u32[144,128]{1,0:T(1,128)}', space=vmem, size = 0x12000, scoped, tag = 'internal scratch']
  #allocation2 [shape = 'f32[36,196]{1,0:T(8,128)}', space=vmem, size = 0xa000, scoped, tag = 'scratch operand']
  %s0 = inlined_call_operand.hbm [shape: f32[2,4,16,16], index: 0, kind: input, shape index: {}]
  %s1 = inlined_call_operand.hbm [shape: f32[2,2,36], index: 1, kind: input, shape index: {}]
  %s2 = inlined_call_operand.hbm [shape: f32[2,2,196], index: 2, kind: output, shape index: {}]
  %s3 = sld [smem:[#allocation0]]
  $region49: #{tpu_custom_call.1} parent=0
    _
  %s5 = ssub.s32 1, %s3
  %s6 = scalar_select 0, %s5, %s3
  $region1: #{tpu_custom_call.1} parent=0
    #allocation3 [shape = 'u8[65536]{0}', space=vmem, size = 0x10000, scoped, tag = 'input window, operand 0']
    #allocation4 [shape = 's32[2]{0}', space=sflag, size = 0x8, scoped, tag = 'scoped memory for tpu_custom_call.1']
    #allocation5 [shape = 's32[2]{0}', space=sflag, size = 0x8, scoped, tag = 'scoped memory for tpu_custom_call.1']
    #allocation6 [shape = 'u8[2048]{0}', space=vmem, size = 0x800, scoped, tag = 'input window, operand 1']
    #allocation7 [shape = 's32[2]{0}', space=sflag, size = 0x8, scoped, tag = 'scoped memory for tpu_custom_call.1']
    #allocation8 [shape = 'u8[4096]{0}', space=vmem, size = 0x1000, scoped, tag = 'output window, operand 0']
    %7 = vsyncpa [#allocation4], 0
    %s8 = scalar_lea.sflag [#allocation4], 1
    %9 = vsyncpa %s8, 0
    %10 = vsyncpa [#allocation7], 0
    %s11 = scalar_lea.sflag [#allocation7], 1
    %12 = vsyncpa %s11, 0
    %13 = vsyncpa [#allocation5], 0
    %s14 = scalar_lea.sflag [#allocation5], 1
    %15 = vsyncpa %s14, 0
    loop: start=0, step=1, limit=4
    $region2: #{tpu_custom_call.1} parent=1 // loop_pre_header
      _
    $region3: #{tpu_custom_call.1} parent=1 // loop_header
      %s17 = sphi 0, %s21
      %p18 = scmp.ge.s32.totalorder %s17, 4
      %s27 = sphi 0, %s29
      %s30 = sphi 0, %s27
      %s31 = sphi 0, %s30
      %s47 = sphi 0, %s31
      %s53 = sphi 0, %s55
      %s56 = sphi 0, %s53
      %s57 = sphi 0, %s56
      %s73 = sphi 0, %s57
      %s79 = sphi 0, %s81
      %s82 = sphi 0, %s79
      %s83 = sphi 0, %s82
      %s99 = sphi 0, %s83
    $region4: #{tpu_custom_call.1} parent=1 // loop_header_branch
      %20 = sbr.rel (%p18) target = $region8
    $region5: #{tpu_custom_call.1} parent=1 // loop_body
      %s22 = ssub.s32 %s17, 1
      %s23 = ssub.s32 %s17, 2
      %s24 = sadd.s32 %s17, 1
      %s25 = ssub.s32 %s17, %s24
      %p26 = scmp.eq.s32.totalorder %s25, 0
      %s28 = sadd.s32 %s27, 1
      %s29 = scalar_select %p26, %s27, %s28
      %p32 = pneg %p26
      %p33 = scmp.eq.s32.totalorder %s17, 1
      %p34 = por %p32, %p33
      %p35 = scmp.ne.s32.totalorder %s27, %s30
      %p36 = scmp.eq.s32.totalorder %s17, 0
      %p37 = por %p35, %p36
      %p38 = scmp.ne.s32.totalorder %s27, %s30
      %p39 = scmp.eq.s32.totalorder %s22, 1
      %p40 = por %p38, %p39
      %p41 = scmp.ne.s32.totalorder %s30, %s31
      %p42 = scmp.eq.s32.totalorder %s22, 0
      %p43 = por %p41, %p42
      %p44 = scmp.ne.s32.totalorder %s30, %s31
      %p45 = scmp.eq.s32.totalorder %s23, 1
      %p46 = por %p44, %p45
      %p48 = scmp.ne.s32.totalorder %s31, %s47
      %p49 = scmp.eq.s32.totalorder %s23, 0
      %p50 = por %p48, %p49
      %s51 = ssub.s32 %s17, %s24
      %p52 = scmp.eq.s32.totalorder %s51, 0
      %s54 = sadd.s32 %s53, 1
      %s55 = scalar_select %p52, %s53, %s54
      %p58 = pneg %p52
      %p59 = scmp.eq.s32.totalorder %s17, 1
      %p60 = por %p58, %p59
      %p61 = scmp.ne.s32.totalorder %s53, %s56
      %p62 = scmp.eq.s32.totalorder %s17, 0
      %p63 = por %p61, %p62
      %p64 = scmp.ne.s32.totalorder %s53, %s56
      %p65 = scmp.eq.s32.totalorder %s22, 1
      %p66 = por %p64, %p65
      %p67 = scmp.ne.s32.totalorder %s56, %s57
      %p68 = scmp.eq.s32.totalorder %s22, 0
      %p69 = por %p67, %p68
      %p70 = scmp.ne.s32.totalorder %s56, %s57
      %p71 = scmp.eq.s32.totalorder %s23, 1
      %p72 = por %p70, %p71
      %p74 = scmp.ne.s32.totalorder %s57, %s73
      %p75 = scmp.eq.s32.totalorder %s23, 0
      %p76 = por %p74, %p75
      %s77 = ssub.s32 %s17, %s24
      %p78 = scmp.eq.s32.totalorder %s77, 0
      %s80 = sadd.s32 %s79, 1
      %s81 = scalar_select %p78, %s79, %s80
      %p84 = pneg %p78
      %p85 = scmp.eq.s32.totalorder %s17, 1
      %p86 = por %p84, %p85
      %p87 = scmp.ne.s32.totalorder %s79, %s82
      %p88 = scmp.eq.s32.totalorder %s17, 0
      %p89 = por %p87, %p88
      %p90 = scmp.ne.s32.totalorder %s79, %s82
      %p91 = scmp.eq.s32.totalorder %s22, 1
      %p92 = por %p90, %p91
      %p93 = scmp.ne.s32.totalorder %s82, %s83
      %p94 = scmp.eq.s32.totalorder %s22, 0
      %p95 = por %p93, %p94
      %p96 = scmp.ne.s32.totalorder %s82, %s83
      %p97 = scmp.eq.s32.totalorder %s23, 1
      %p98 = por %p96, %p97
      %p100 = scmp.ne.s32.totalorder %s83, %s99
      %p101 = scmp.eq.s32.totalorder %s23, 0
      %p102 = por %p100, %p101
      %p103 = scmp.le.s32.totalorder 1, %s17
      %p104 = scmp.lt.s32.totalorder %s17, 3
      %p105 = pnand %p103, %p104
      %p106 = pneg %p105
      // Predicated region
      $region9: #{tpu_custom_call.1} parent=5 // pred_check
        _
      $region10: #{tpu_custom_call.1} parent=5 // pred_check_branch
        %108 = sbr.rel (%p105) target = $region12
      $region11: #{tpu_custom_call.1} parent=5 // pred_region
        %s109 = ssub.s32 %s17, 1
      $region12: #{tpu_custom_call.1} parent=5 // pred_fallthru
        _
      %p110 = scmp.lt.s32.totalorder %s17, 2
      // Predicated region
      $region13: #{tpu_custom_call.1} parent=5 // pred_check
        %p111 = pneg %p110
      $region14: #{tpu_custom_call.1} parent=5 // pred_check_branch
        %113 = sbr.rel (%p111) target = $region16
      $region15: #{tpu_custom_call.1} parent=5 // pred_region
        // Predicated region
        $region17: #{tpu_custom_call.1} parent=15 // pred_check
          %p114 = pneg %p37
        $region18: #{tpu_custom_call.1} parent=15 // pred_check_branch
          %116 = sbr.rel (%p114) target = $region20
        $region19: #{tpu_custom_call.1} parent=15 // pred_region
          %s117 = sand.u32 %s27, 1
          %s118 = scalar_lea.sflag [#allocation4], %s117
          %s119 = sand.u32 %s27, 1
          %s120 = smul.addr %s119, 64
          %s121 = scalar_lea.vmem [#allocation3], %s120
          %s123 = ssub.s32 1024, 1024
          %124 = vsyncadd %s118, %s123
          %s125 = smul.addr %s17, 8
          %s126 = smul.addr %s125, 128
          %s127 = scalar_lea.hbm %s0, %s126
          %s128 = sshll.u32 %s121, 4
          %s129 = int_to_ptr.vmem [resolvable:$true] %s128
          %134 = dma.hbm_to_vmem [thread:$0]  %s127, 1024, %s129, %s118, 128, 128, 8
        $region20: #{tpu_custom_call.1} parent=15 // pred_fallthru
          _
        // Predicated region
        $region21: #{tpu_custom_call.1} parent=15 // pred_check
          %p135 = pneg %p63
        $region22: #{tpu_custom_call.1} parent=15 // pred_check_branch
          %137 = sbr.rel (%p135) target = $region24
        $region23: #{tpu_custom_call.1} parent=15 // pred_region
          %s138 = sand.u32 %s53, 1
          %s139 = scalar_lea.sflag [#allocation7], %s138
          %s140 = sand.u32 %s53, 1
          %s141 = smul.addr %s140, 2
          %s142 = scalar_lea.vmem [#allocation6], %s141
          %s144 = ssub.s32 32, 32
          %145 = vsyncadd %s139, %s144
          %s146 = smul.addr %s17, 32
          %s147 = scalar_lea.hbm %s1, %s146
          %s149 = sshll.u32 %s142, 4
          %s150 = int_to_ptr.vmem [resolvable:$true] %s149
          %152 = dma.hbm_to_vmem [thread:$0]  %s147, 32, %s150, %s139
        $region24: #{tpu_custom_call.1} parent=15 // pred_fallthru
          _
      $region16: #{tpu_custom_call.1} parent=5 // pred_fallthru
        _
      %p153 = scmp.le.s32.totalorder 1, %s17
      %p154 = scmp.lt.s32.totalorder %s17, 3
      %p155 = pnand %p153, %p154
      %p156 = pneg %p155
      // Predicated region
      $region25: #{tpu_custom_call.1} parent=5 // pred_check
        _
      $region26: #{tpu_custom_call.1} parent=5 // pred_check_branch
        %158 = sbr.rel (%p155) target = $region28
      $region27: #{tpu_custom_call.1} parent=5 // pred_region
        %s159 = ssub.s32 %s17, 1
        %s160 = sand.u32 %s30, 1
        %s161 = scalar_lea.sflag [#allocation4], %s160
        %s162 = sand.u32 %s30, 1
        %s163 = smul.addr %s162, 64
        %s164 = scalar_lea.vmem [#allocation3], %s163
        // Predicated region
        $region29: #{tpu_custom_call.1} parent=27 // pred_check
          %p165 = pneg %p43
        $region30: #{tpu_custom_call.1} parent=27 // pred_check_branch
          %167 = sbr.rel (%p165) target = $region32
        $region31: #{tpu_custom_call.1} parent=27 // pred_region
          %168 = dma.done %s161, 1024
        $region32: #{tpu_custom_call.1} parent=27 // pred_fallthru
          _
        %s169 = sand.u32 %s56, 1
        %s170 = scalar_lea.sflag [#allocation7], %s169
        %s171 = sand.u32 %s56, 1
        %s172 = smul.addr %s171, 2
        %s173 = scalar_lea.vmem [#allocation6], %s172
        // Predicated region
        $region33: #{tpu_custom_call.1} parent=27 // pred_check
          %p174 = pneg %p69
        $region34: #{tpu_custom_call.1} parent=27 // pred_check_branch
          %176 = sbr.rel (%p174) target = $region36
        $region35: #{tpu_custom_call.1} parent=27 // pred_region
          %177 = dma.done %s170, 32
        $region36: #{tpu_custom_call.1} parent=27 // pred_fallthru
          _
        %s178 = sand.u32 %s30, 1
        %s179 = scalar_lea.sflag [#allocation4], %s178
        %s180 = sand.u32 %s30, 1
        %s181 = smul.addr %s180, 64
        %s182 = scalar_lea.vmem [#allocation3], %s181
        %p183 = pneg %p43
        %p184 = pneg %p40
        %s185 = sand.u32 %s56, 1
        %s186 = scalar_lea.sflag [#allocation7], %s185
        %s187 = sand.u32 %s56, 1
        %s188 = smul.addr %s187, 2
        %s189 = scalar_lea.vmem [#allocation6], %s188
        %p190 = pneg %p69
        %p191 = pneg %p66
        %p192 = pneg %p95
        %p193 = pneg %p92
        %s194 = sand.u32 %s82, 1
        %s195 = scalar_lea.sflag [#allocation5], %s194
        %s196 = sand.u32 %s82, 1
        %s197 = smul.addr %s196, 4
        %s198 = scalar_lea.vmem [#allocation8], %s197
        %v199 = vld [vmem:[%s164] sm:$0xff]
        %v200 = vld [vmem:[%s164 + $0x8] sm:$0xff]
        %v201 = vld [vmem:[%s164 + $0x10] sm:$0xff]
        %v202 = vld [vmem:[%s164 + $0x18] sm:$0xff]
        %v203 = vld [vmem:[%s164 + $0x20] sm:$0xff]
        %v204 = vld [vmem:[%s164 + $0x28] sm:$0xff]
        %v205 = vld [vmem:[%s164 + $0x30] sm:$0xff]
        %v206 = vld [vmem:[%s164 + $0x38] sm:$0xff]
        %v207 = vcombine.low %v199, %v203
        %v208 = vcombine.high %v199, %v203
        %v210 = vunpack.c.l.s4 1983009808
        %v211 = vunpack.c.0.s8 %v210
        %v212 = vlaneseq
        %v213 = vshrl.u32 %v212, 7
        %v214 = vsub.s32 %v211, %v213
        %v215 = vrot.slane %v207, %v214
        %v217 = vunpack.c.l.s4 1983009808
        %v218 = vunpack.c.0.s8 %v217
        %v219 = vlaneseq
        %v220 = vshrl.u32 %v219, 7
        %v221 = vsub.s32 %v218, %v220
        %v222 = vrot.slane %v208, %v221
        %v223 = vcombine.low %v201, %v205
        %v224 = vcombine.high %v201, %v205
        %v226 = vunpack.c.l.s4 1983009808
        %v227 = vunpack.c.0.s8 %v226
        %v228 = vlaneseq
        %v229 = vshrl.u32 %v228, 7
        %v230 = vsub.s32 %v227, %v229
        %v231 = vrot.slane %v223, %v230
        %v233 = vunpack.c.l.s4 1983009808
        %v234 = vunpack.c.0.s8 %v233
        %v235 = vlaneseq
        %v236 = vshrl.u32 %v235, 7
        %v237 = vsub.s32 %v234, %v236
        %v238 = vrot.slane %v224, %v237
        %v239 = vcombine.low %v215, %v231
        %v240 = vcombine.high %v215, %v231
        %v242 = vunpack.c.l.s4 1934713408
        %v243 = vunpack.c.0.s8 %v242
        %v244 = vlaneseq
        %v245 = vshrl.u32 %v244, 7
        %v246 = vsub.s32 %v243, %v245
        %v247 = vrot.slane %v239, %v246
        %v249 = vunpack.c.l.s4 1934713408
        %v250 = vunpack.c.0.s8 %v249
        %v251 = vlaneseq
        %v252 = vshrl.u32 %v251, 7
        %v253 = vsub.s32 %v250, %v252
        %v254 = vrot.slane %v240, %v253
        %v255 = vcombine.low %v222, %v238
        %v256 = vcombine.high %v222, %v238
        %v258 = vunpack.c.l.s4 1934713408
        %v259 = vunpack.c.0.s8 %v258
        %v260 = vlaneseq
        %v261 = vshrl.u32 %v260, 7
        %v262 = vsub.s32 %v259, %v261
        %v263 = vrot.slane %v255, %v262
        %v265 = vunpack.c.l.s4 1934713408
        %v266 = vunpack.c.0.s8 %v265
        %v267 = vlaneseq
        %v268 = vshrl.u32 %v267, 7
        %v269 = vsub.s32 %v266, %v268
        %v270 = vrot.slane %v256, %v269
        %v271 = vcombine.high %v247, 0.0
        %v272 = vcombine.high %v254, 0.0
        %v273 = vcombine.high %v263, 0.0
        %v274 = vcombine.high %v270, 0.0
        %v275 = vcombine.low %v200, %v204
        %v276 = vcombine.high %v200, %v204
        %v278 = vunpack.c.l.s4 1983009808
        %v279 = vunpack.c.0.s8 %v278
        %v280 = vlaneseq
        %v281 = vshrl.u32 %v280, 7
        %v282 = vsub.s32 %v279, %v281
        %v283 = vrot.slane %v275, %v282
        %v285 = vunpack.c.l.s4 1983009808
        %v286 = vunpack.c.0.s8 %v285
        %v287 = vlaneseq
        %v288 = vshrl.u32 %v287, 7
        %v289 = vsub.s32 %v286, %v288
        %v290 = vrot.slane %v276, %v289
        %v291 = vcombine.low %v202, %v206
        %v292 = vcombine.high %v202, %v206
        %v294 = vunpack.c.l.s4 1983009808
        %v295 = vunpack.c.0.s8 %v294
        %v296 = vlaneseq
        %v297 = vshrl.u32 %v296, 7
        %v298 = vsub.s32 %v295, %v297
        %v299 = vrot.slane %v291, %v298
        %v301 = vunpack.c.l.s4 1983009808
        %v302 = vunpack.c.0.s8 %v301
        %v303 = vlaneseq
        %v304 = vshrl.u32 %v303, 7
        %v305 = vsub.s32 %v302, %v304
        %v306 = vrot.slane %v292, %v305
        %v307 = vcombine.low %v283, %v299
        %v308 = vcombine.high %v283, %v299
        %v310 = vunpack.c.l.s4 1934713408
        %v311 = vunpack.c.0.s8 %v310
        %v312 = vlaneseq
        %v313 = vshrl.u32 %v312, 7
        %v314 = vsub.s32 %v311, %v313
        %v315 = vrot.slane %v307, %v314
        %v317 = vunpack.c.l.s4 1934713408
        %v318 = vunpack.c.0.s8 %v317
        %v319 = vlaneseq
        %v320 = vshrl.u32 %v319, 7
        %v321 = vsub.s32 %v318, %v320
        %v322 = vrot.slane %v308, %v321
        %v323 = vcombine.low %v290, %v306
        %v325 = vunpack.c.l.s4 1934713408
        %v326 = vunpack.c.0.s8 %v325
        %v327 = vlaneseq
        %v328 = vshrl.u32 %v327, 7
        %v329 = vsub.s32 %v326, %v328
        %v330 = vrot.slane %v323, %v329
        %v331 = vcombine.high %v315, 0.0
        %v332 = vcombine.high %v322, 0.0
        %v333 = vcombine.high %v330, 0.0
        %335 = vrot.lane.b32.xlu0 %v271, 14
        %v336 = vpop.permute.xlu0 %335
        %339 = vrot.lane.b32.xlu0 %v254, 28
        %v340 = vpop.permute.xlu0 %339
        %343 = vrot.lane.b32.xlu0 %v272, 42
        %v344 = vpop.permute.xlu0 %343
        %347 = vrot.lane.b32.xlu0 %v263, 56
        %v348 = vpop.permute.xlu0 %347
        %351 = vrot.lane.b32.xlu0 %v273, 70
        %v352 = vpop.permute.xlu0 %351
        %355 = vrot.lane.b32.xlu0 %v270, 84
        %v356 = vpop.permute.xlu0 %355
        %359 = vrot.lane.b32.xlu0 %v274, 98
        %v360 = vpop.permute.xlu0 %359
        %363 = vrot.lane.b32.xlu0 %v315, 112
        %v364 = vpop.permute.xlu0 %363
        %367 = vrot.lane.b32.xlu0 %v331, 126
        %v368 = vpop.permute.xlu0 %367
        %371 = vrot.lane.b32.xlu0 %v322, 12
        %v372 = vpop.permute.xlu0 %371
        %375 = vrot.lane.b32.xlu0 %v332, 26
        %v376 = vpop.permute.xlu0 %375
        %379 = vrot.lane.b32.xlu0 %v330, 40
        %v380 = vpop.permute.xlu0 %379
        %383 = vrot.lane.b32.xlu0 %v333, 54
        %v384 = vpop.permute.xlu0 %383
        %vm386 = vcmask 113664
        %v387 = vsel %vm386, %v247, %v336
        %vm388 = vcmask 228352
        %v389 = vsel %vm388, %v387, %v340
        %vm390 = vcmask 343040
        %v391 = vsel %vm390, %v389, %v344
        %vm392 = vcmask 457728
        %v393 = vsel %vm392, %v391, %v348
        %vm394 = vcmask 572416
        %v395 = vsel %vm394, %v393, %v352
        %vm396 = vcmask 687104
        %v397 = vsel %vm396, %v395, %v356
        %vm398 = vcmask 801792
        %v399 = vsel %vm398, %v397, %v360
        %vm400 = vcmask 916480
        %v401 = vsel %vm400, %v399, %v364
        %vm402 = vcmask 1031168
        %v403 = vsel %vm402, %v401, %v368
        %vm404 = vcmask 97280
        %v405 = vsel %vm404, %v368, %v372
        %vm406 = vcmask 211968
        %v407 = vsel %vm406, %v405, %v376
        %vm408 = vcmask 326656
        %v409 = vsel %vm408, %v407, %v380
        %vm410 = vcmask 441344
        %v411 = vsel %vm410, %v409, %v384
        %412 = vst [vmem:[#allocation2] sm:$0xf] %v403
        %vm413 = vcmask 551936
        %414 = vst.msk [vmem:[#allocation2 + $0x8] sm:$0xf] %vm413, %v411
        %423 = vrot.lane.b32.xlu0 %v199, 127
        %v424 = vpop.permute.xlu0 %423
        %425 = vrot.lane.b32.xlu0 %v200, 127
        %v426 = vpop.permute.xlu0 %425
        %427 = vrot.lane.b32.xlu0 %v201, 127
        %v428 = vpop.permute.xlu0 %427
        %429 = vrot.lane.b32.xlu0 %v202, 127
        %v430 = vpop.permute.xlu0 %429
        %431 = vrot.lane.b32.xlu0 %v203, 127
        %v432 = vpop.permute.xlu0 %431
        %433 = vrot.lane.b32.xlu0 %v204, 127
        %v434 = vpop.permute.xlu0 %433
        %435 = vrot.lane.b32.xlu0 %v205, 127
        %v436 = vpop.permute.xlu0 %435
        %437 = vrot.lane.b32.xlu0 %v206, 127
        %v438 = vpop.permute.xlu0 %437
        %v447 = vcombine.low %v424, %v432
        %v448 = vcombine.high %v424, %v432
        %v450 = vunpack.c.l.s4 1983009808
        %v451 = vunpack.c.0.s8 %v450
        %v452 = vlaneseq
        %v453 = vshrl.u32 %v452, 7
        %v454 = vsub.s32 %v451, %v453
        %v455 = vrot.slane %v447, %v454
        %v457 = vunpack.c.l.s4 1983009808
        %v458 = vunpack.c.0.s8 %v457
        %v459 = vlaneseq
        %v460 = vshrl.u32 %v459, 7
        %v461 = vsub.s32 %v458, %v460
        %v462 = vrot.slane %v448, %v461
        %v463 = vcombine.low %v428, %v436
        %v464 = vcombine.high %v428, %v436
        %v466 = vunpack.c.l.s4 1983009808
        %v467 = vunpack.c.0.s8 %v466
        %v468 = vlaneseq
        %v469 = vshrl.u32 %v468, 7
        %v470 = vsub.s32 %v467, %v469
        %v471 = vrot.slane %v463, %v470
        %v473 = vunpack.c.l.s4 1983009808
        %v474 = vunpack.c.0.s8 %v473
        %v475 = vlaneseq
        %v476 = vshrl.u32 %v475, 7
        %v477 = vsub.s32 %v474, %v476
        %v478 = vrot.slane %v464, %v477
        %v479 = vcombine.low %v455, %v471
        %v480 = vcombine.high %v455, %v471
        %v482 = vunpack.c.l.s4 1934713408
        %v483 = vunpack.c.0.s8 %v482
        %v484 = vlaneseq
        %v485 = vshrl.u32 %v484, 7
        %v486 = vsub.s32 %v483, %v485
        %v487 = vrot.slane %v479, %v486
        %v489 = vunpack.c.l.s4 1934713408
        %v490 = vunpack.c.0.s8 %v489
        %v491 = vlaneseq
        %v492 = vshrl.u32 %v491, 7
        %v493 = vsub.s32 %v490, %v492
        %v494 = vrot.slane %v480, %v493
        %v495 = vcombine.low %v462, %v478
        %v496 = vcombine.high %v462, %v478
        %v498 = vunpack.c.l.s4 1934713408
        %v499 = vunpack.c.0.s8 %v498
        %v500 = vlaneseq
        %v501 = vshrl.u32 %v500, 7
        %v502 = vsub.s32 %v499, %v501
        %v503 = vrot.slane %v495, %v502
        %v505 = vunpack.c.l.s4 1934713408
        %v506 = vunpack.c.0.s8 %v505
        %v507 = vlaneseq
        %v508 = vshrl.u32 %v507, 7
        %v509 = vsub.s32 %v506, %v508
        %v510 = vrot.slane %v496, %v509
        %v511 = vcombine.high %v487, 0.0
        %v512 = vcombine.high %v494, 0.0
        %v513 = vcombine.high %v503, 0.0
        %v514 = vcombine.high %v510, 0.0
        %v515 = vcombine.low %v426, %v434
        %v516 = vcombine.high %v426, %v434
        %v518 = vunpack.c.l.s4 1983009808
        %v519 = vunpack.c.0.s8 %v518
        %v520 = vlaneseq
        %v521 = vshrl.u32 %v520, 7
        %v522 = vsub.s32 %v519, %v521
        %v523 = vrot.slane %v515, %v522
        %v525 = vunpack.c.l.s4 1983009808
        %v526 = vunpack.c.0.s8 %v525
        %v527 = vlaneseq
        %v528 = vshrl.u32 %v527, 7
        %v529 = vsub.s32 %v526, %v528
        %v530 = vrot.slane %v516, %v529
        %v531 = vcombine.low %v430, %v438
        %v532 = vcombine.high %v430, %v438
        %v534 = vunpack.c.l.s4 1983009808
        %v535 = vunpack.c.0.s8 %v534
        %v536 = vlaneseq
        %v537 = vshrl.u32 %v536, 7
        %v538 = vsub.s32 %v535, %v537
        %v539 = vrot.slane %v531, %v538
        %v541 = vunpack.c.l.s4 1983009808
        %v542 = vunpack.c.0.s8 %v541
        %v543 = vlaneseq
        %v544 = vshrl.u32 %v543, 7
        %v545 = vsub.s32 %v542, %v544
        %v546 = vrot.slane %v532, %v545
        %v547 = vcombine.low %v523, %v539
        %v548 = vcombine.high %v523, %v539
        %v550 = vunpack.c.l.s4 1934713408
        %v551 = vunpack.c.0.s8 %v550
        %v552 = vlaneseq
        %v553 = vshrl.u32 %v552, 7
        %v554 = vsub.s32 %v551, %v553
        %v555 = vrot.slane %v547, %v554
        %v557 = vunpack.c.l.s4 1934713408
        %v558 = vunpack.c.0.s8 %v557
        %v559 = vlaneseq
        %v560 = vshrl.u32 %v559, 7
        %v561 = vsub.s32 %v558, %v560
        %v562 = vrot.slane %v548, %v561
        %v563 = vcombine.low %v530, %v546
        %v565 = vunpack.c.l.s4 1934713408
        %v566 = vunpack.c.0.s8 %v565
        %v567 = vlaneseq
        %v568 = vshrl.u32 %v567, 7
        %v569 = vsub.s32 %v566, %v568
        %v570 = vrot.slane %v563, %v569
        %v571 = vcombine.high %v555, 0.0
        %v572 = vcombine.high %v562, 0.0
        %v573 = vcombine.high %v570, 0.0
        %575 = vrot.lane.b32.xlu0 %v511, 14
        %v576 = vpop.permute.xlu0 %575
        %579 = vrot.lane.b32.xlu0 %v494, 28
        %v580 = vpop.permute.xlu0 %579
        %583 = vrot.lane.b32.xlu0 %v512, 42
        %v584 = vpop.permute.xlu0 %583
        %587 = vrot.lane.b32.xlu0 %v503, 56
        %v588 = vpop.permute.xlu0 %587
        %591 = vrot.lane.b32.xlu0 %v513, 70
        %v592 = vpop.permute.xlu0 %591
        %595 = vrot.lane.b32.xlu0 %v510, 84
        %v596 = vpop.permute.xlu0 %595
        %599 = vrot.lane.b32.xlu0 %v514, 98
        %v600 = vpop.permute.xlu0 %599
        %603 = vrot.lane.b32.xlu0 %v555, 112
        %v604 = vpop.permute.xlu0 %603
        %607 = vrot.lane.b32.xlu0 %v571, 126
        %v608 = vpop.permute.xlu0 %607
        %611 = vrot.lane.b32.xlu0 %v562, 12
        %v612 = vpop.permute.xlu0 %611
        %615 = vrot.lane.b32.xlu0 %v572, 26
        %v616 = vpop.permute.xlu0 %615
        %619 = vrot.lane.b32.xlu0 %v570, 40
        %v620 = vpop.permute.xlu0 %619
        %623 = vrot.lane.b32.xlu0 %v573, 54
        %v624 = vpop.permute.xlu0 %623
        %v626 = vsel %vm386, %v487, %v576
        %v627 = vsel %vm388, %v626, %v580
        %v628 = vsel %vm390, %v627, %v584
        %v629 = vsel %vm392, %v628, %v588
        %v630 = vsel %vm394, %v629, %v592
        %v631 = vsel %vm396, %v630, %v596
        %v632 = vsel %vm398, %v631, %v600
        %v633 = vsel %vm400, %v632, %v604
        %v634 = vsel %vm402, %v633, %v608
        %v635 = vsel %vm404, %v608, %v612
        %v636 = vsel %vm406, %v635, %v616
        %v637 = vsel %vm408, %v636, %v620
        %v638 = vsel %vm410, %v637, %v624
        %v641 = vrot.slane %v634, 4
        %v642 = vrot.slane %v638, 4
        %645 = vst [vmem:[#allocation2] sm:$0xf0] %v641
        %vm646 = vcmask 556036
        %647 = vst.msk [vmem:[#allocation2 + $0x8] sm:$0xf0] %vm646, %v642
        %648 = vrot.lane.b32.xlu0 %v199, 126
        %v649 = vpop.permute.xlu0 %648
        %650 = vrot.lane.b32.xlu0 %v200, 126
        %v651 = vpop.permute.xlu0 %650
        %652 = vrot.lane.b32.xlu0 %v201, 126
        %v653 = vpop.permute.xlu0 %652
        %654 = vrot.lane.b32.xlu0 %v202, 126
        %v655 = vpop.permute.xlu0 %654
        %656 = vrot.lane.b32.xlu0 %v203, 126
        %v657 = vpop.permute.xlu0 %656
        %658 = vrot.lane.b32.xlu0 %v204, 126
        %v659 = vpop.permute.xlu0 %658
        %660 = vrot.lane.b32.xlu0 %v205, 126
        %v661 = vpop.permute.xlu0 %660
        %662 = vrot.lane.b32.xlu0 %v206, 126
        %v663 = vpop.permute.xlu0 %662
        %v672 = vcombine.low %v649, %v657
        %v673 = vcombine.high %v649, %v657
        %v675 = vunpack.c.l.s4 1983009808
        %v676 = vunpack.c.0.s8 %v675
        %v677 = vlaneseq
        %v678 = vshrl.u32 %v677, 7
        %v679 = vsub.s32 %v676, %v678
        %v680 = vrot.slane %v672, %v679
        %v682 = vunpack.c.l.s4 1983009808
        %v683 = vunpack.c.0.s8 %v682
        %v684 = vlaneseq
        %v685 = vshrl.u32 %v684, 7
        %v686 = vsub.s32 %v683, %v685
        %v687 = vrot.slane %v673, %v686
        %v688 = vcombine.low %v653, %v661
        %v689 = vcombine.high %v653, %v661
        %v691 = vunpack.c.l.s4 1983009808
        %v692 = vunpack.c.0.s8 %v691
        %v693 = vlaneseq
        %v694 = vshrl.u32 %v693, 7
        %v695 = vsub.s32 %v692, %v694
        %v696 = vrot.slane %v688, %v695
        %v698 = vunpack.c.l.s4 1983009808
        %v699 = vunpack.c.0.s8 %v698
        %v700 = vlaneseq
        %v701 = vshrl.u32 %v700, 7
        %v702 = vsub.s32 %v699, %v701
        %v703 = vrot.slane %v689, %v702
        %v704 = vcombine.low %v680, %v696
        %v705 = vcombine.high %v680, %v696
        %v707 = vunpack.c.l.s4 1934713408
        %v708 = vunpack.c.0.s8 %v707
        %v709 = vlaneseq
        %v710 = vshrl.u32 %v709, 7
        %v711 = vsub.s32 %v708, %v710
        %v712 = vrot.slane %v704, %v711
        %v714 = vunpack.c.l.s4 1934713408
        %v715 = vunpack.c.0.s8 %v714
        %v716 = vlaneseq
        %v717 = vshrl.u32 %v716, 7
        %v718 = vsub.s32 %v715, %v717
        %v719 = vrot.slane %v705, %v718
        %v720 = vcombine.low %v687, %v703
        %v721 = vcombine.high %v687, %v703
        %v723 = vunpack.c.l.s4 1934713408
        %v724 = vunpack.c.0.s8 %v723
        %v725 = vlaneseq
        %v726 = vshrl.u32 %v725, 7
        %v727 = vsub.s32 %v724, %v726
        %v728 = vrot.slane %v720, %v727
        %v730 = vunpack.c.l.s4 1934713408
        %v731 = vunpack.c.0.s8 %v730
        %v732 = vlaneseq
        %v733 = vshrl.u32 %v732, 7
        %v734 = vsub.s32 %v731, %v733
        %v735 = vrot.slane %v721, %v734
        %v736 = vcombine.high %v712, 0.0
        %v737 = vcombine.high %v719, 0.0
        %v738 = vcombine.high %v728, 0.0
        %v739 = vcombine.high %v735, 0.0
        %v740 = vcombine.low %v651, %v659
        %v741 = vcombine.high %v651, %v659
        %v743 = vunpack.c.l.s4 1983009808
        %v744 = vunpack.c.0.s8 %v743
        %v745 = vlaneseq
        %v746 = vshrl.u32 %v745, 7
        %v747 = vsub.s32 %v744, %v746
        %v748 = vrot.slane %v740, %v747
        %v750 = vunpack.c.l.s4 1983009808
        %v751 = vunpack.c.0.s8 %v750
        %v752 = vlaneseq
        %v753 = vshrl.u32 %v752, 7
        %v754 = vsub.s32 %v751, %v753
        %v755 = vrot.slane %v741, %v754
        %v756 = vcombine.low %v655, %v663
        %v757 = vcombine.high %v655, %v663
        %v759 = vunpack.c.l.s4 1983009808
        %v760 = vunpack.c.0.s8 %v759
        %v761 = vlaneseq
        %v762 = vshrl.u32 %v761, 7
        %v763 = vsub.s32 %v760, %v762
        %v764 = vrot.slane %v756, %v763
        %v766 = vunpack.c.l.s4 1983009808
        %v767 = vunpack.c.0.s8 %v766
        %v768 = vlaneseq
        %v769 = vshrl.u32 %v768, 7
        %v770 = vsub.s32 %v767, %v769
        %v771 = vrot.slane %v757, %v770
        %v772 = vcombine.low %v748, %v764
        %v773 = vcombine.high %v748, %v764
        %v775 = vunpack.c.l.s4 1934713408
        %v776 = vunpack.c.0.s8 %v775
        %v777 = vlaneseq
        %v778 = vshrl.u32 %v777, 7
        %v779 = vsub.s32 %v776, %v778
        %v780 = vrot.slane %v772, %v779
        %v782 = vunpack.c.l.s4 1934713408
        %v783 = vunpack.c.0.s8 %v782
        %v784 = vlaneseq
        %v785 = vshrl.u32 %v784, 7
        %v786 = vsub.s32 %v783, %v785
        %v787 = vrot.slane %v773, %v786
        %v788 = vcombine.low %v755, %v771
        %v790 = vunpack.c.l.s4 1934713408
        %v791 = vunpack.c.0.s8 %v790
        %v792 = vlaneseq
        %v793 = vshrl.u32 %v792, 7
        %v794 = vsub.s32 %v791, %v793
        %v795 = vrot.slane %v788, %v794
        %v796 = vcombine.high %v780, 0.0
        %v797 = vcombine.high %v787, 0.0
        %v798 = vcombine.high %v795, 0.0
        %800 = vrot.lane.b32.xlu0 %v736, 14
        %v801 = vpop.permute.xlu0 %800
        %804 = vrot.lane.b32.xlu0 %v719, 28
        %v805 = vpop.permute.xlu0 %804
        %808 = vrot.lane.b32.xlu0 %v737, 42
        %v809 = vpop.permute.xlu0 %808
        %812 = vrot.lane.b32.xlu0 %v728, 56
        %v813 = vpop.permute.xlu0 %812
        %816 = vrot.lane.b32.xlu0 %v738, 70
        %v817 = vpop.permute.xlu0 %816
        %820 = vrot.lane.b32.xlu0 %v735, 84
        %v821 = vpop.permute.xlu0 %820
        %824 = vrot.lane.b32.xlu0 %v739, 98
        %v825 = vpop.permute.xlu0 %824
        %828 = vrot.lane.b32.xlu0 %v780, 112
        %v829 = vpop.permute.xlu0 %828
        %832 = vrot.lane.b32.xlu0 %v796, 126
        %v833 = vpop.permute.xlu0 %832
        %836 = vrot.lane.b32.xlu0 %v787, 12
        %v837 = vpop.permute.xlu0 %836
        %840 = vrot.lane.b32.xlu0 %v797, 26
        %v841 = vpop.permute.xlu0 %840
        %844 = vrot.lane.b32.xlu0 %v795, 40
        %v845 = vpop.permute.xlu0 %844
        %848 = vrot.lane.b32.xlu0 %v798, 54
        %v849 = vpop.permute.xlu0 %848
        %v851 = vsel %vm386, %v712, %v801
        %v852 = vsel %vm388, %v851, %v805
        %v853 = vsel %vm390, %v852, %v809
        %v854 = vsel %vm392, %v853, %v813
        %v855 = vsel %vm394, %v854, %v817
        %v856 = vsel %vm396, %v855, %v821
        %v857 = vsel %vm398, %v856, %v825
        %v858 = vsel %vm400, %v857, %v829
        %v859 = vsel %vm402, %v858, %v833
        %v860 = vsel %vm404, %v833, %v837
        %v861 = vsel %vm406, %v860, %v841
        %v862 = vsel %vm408, %v861, %v845
        %v863 = vsel %vm410, %v862, %v849
        %864 = vst [vmem:[#allocation2 + $0x10] sm:$0xf] %v859
        %865 = vst.msk [vmem:[#allocation2 + $0x18] sm:$0xf] %vm413, %v863
        %vm866 = vcmask 1046528
        %v867 = vrot.slane %v199, 1
        %v868 = vrot.slane %v200, 1
        %v869 = vsel %vm866, %v867, %v868
        %v870 = vrot.slane %v201, 1
        %v871 = vrot.slane %v202, 1
        %v872 = vsel %vm866, %v870, %v871
        %v873 = vrot.slane %v203, 1
        %v874 = vrot.slane %v204, 1
        %v875 = vsel %vm866, %v873, %v874
        %v876 = vrot.slane %v205, 1
        %v877 = vrot.slane %v206, 1
        %v878 = vsel %vm866, %v876, %v877
        %v887 = vcombine.low %v869, %v875
        %v888 = vcombine.high %v869, %v875
        %v890 = vunpack.c.l.s4 1983009808
        %v891 = vunpack.c.0.s8 %v890
        %v892 = vlaneseq
        %v893 = vshrl.u32 %v892, 7
        %v894 = vsub.s32 %v891, %v893
        %v895 = vrot.slane %v887, %v894
        %v897 = vunpack.c.l.s4 1983009808
        %v898 = vunpack.c.0.s8 %v897
        %v899 = vlaneseq
        %v900 = vshrl.u32 %v899, 7
        %v901 = vsub.s32 %v898, %v900
        %v902 = vrot.slane %v888, %v901
        %v903 = vcombine.low %v872, %v878
        %v904 = vcombine.high %v872, %v878
        %v906 = vunpack.c.l.s4 1983009808
        %v907 = vunpack.c.0.s8 %v906
        %v908 = vlaneseq
        %v909 = vshrl.u32 %v908, 7
        %v910 = vsub.s32 %v907, %v909
        %v911 = vrot.slane %v903, %v910
        %v913 = vunpack.c.l.s4 1983009808
        %v914 = vunpack.c.0.s8 %v913
        %v915 = vlaneseq
        %v916 = vshrl.u32 %v915, 7
        %v917 = vsub.s32 %v914, %v916
        %v918 = vrot.slane %v904, %v917
        %v919 = vcombine.low %v895, %v911
        %v920 = vcombine.high %v895, %v911
        %v922 = vunpack.c.l.s4 1934713408
        %v923 = vunpack.c.0.s8 %v922
        %v924 = vlaneseq
        %v925 = vshrl.u32 %v924, 7
        %v926 = vsub.s32 %v923, %v925
        %v927 = vrot.slane %v919, %v926
        %v929 = vunpack.c.l.s4 1934713408
        %v930 = vunpack.c.0.s8 %v929
        %v931 = vlaneseq
        %v932 = vshrl.u32 %v931, 7
        %v933 = vsub.s32 %v930, %v932
        %v934 = vrot.slane %v920, %v933
        %v935 = vcombine.low %v902, %v918
        %v936 = vcombine.high %v902, %v918
        %v938 = vunpack.c.l.s4 1934713408
        %v939 = vunpack.c.0.s8 %v938
        %v940 = vlaneseq
        %v941 = vshrl.u32 %v940, 7
        %v942 = vsub.s32 %v939, %v941
        %v943 = vrot.slane %v935, %v942
        %v945 = vunpack.c.l.s4 1934713408
        %v946 = vunpack.c.0.s8 %v945
        %v947 = vlaneseq
        %v948 = vshrl.u32 %v947, 7
        %v949 = vsub.s32 %v946, %v948
        %v950 = vrot.slane %v936, %v949
        %v951 = vcombine.high %v927, 0.0
        %v952 = vcombine.high %v934, 0.0
        %v953 = vcombine.high %v943, 0.0
        %v954 = vcombine.high %v950, 0.0
        %v955 = vcombine.low %v868, %v874
        %v956 = vcombine.high %v868, %v874
        %v958 = vunpack.c.l.s4 1983009808
        %v959 = vunpack.c.0.s8 %v958
        %v960 = vlaneseq
        %v961 = vshrl.u32 %v960, 7
        %v962 = vsub.s32 %v959, %v961
        %v963 = vrot.slane %v955, %v962
        %v965 = vunpack.c.l.s4 1983009808
        %v966 = vunpack.c.0.s8 %v965
        %v967 = vlaneseq
        %v968 = vshrl.u32 %v967, 7
        %v969 = vsub.s32 %v966, %v968
        %v970 = vrot.slane %v956, %v969
        %v971 = vcombine.low %v871, %v877
        %v972 = vcombine.high %v871, %v877
        %v974 = vunpack.c.l.s4 1983009808
        %v975 = vunpack.c.0.s8 %v974
        %v976 = vlaneseq
        %v977 = vshrl.u32 %v976, 7
        %v978 = vsub.s32 %v975, %v977
        %v979 = vrot.slane %v971, %v978
        %v981 = vunpack.c.l.s4 1983009808
        %v982 = vunpack.c.0.s8 %v981
        %v983 = vlaneseq
        %v984 = vshrl.u32 %v983, 7
        %v985 = vsub.s32 %v982, %v984
        %v986 = vrot.slane %v972, %v985
        %v987 = vcombine.low %v963, %v979
        %v988 = vcombine.high %v963, %v979
        %v990 = vunpack.c.l.s4 1934713408
        %v991 = vunpack.c.0.s8 %v990
        %v992 = vlaneseq
        %v993 = vshrl.u32 %v992, 7
        %v994 = vsub.s32 %v991, %v993
        %v995 = vrot.slane %v987, %v994
        %v997 = vunpack.c.l.s4 1934713408
        %v998 = vunpack.c.0.s8 %v997
        %v999 = vlaneseq
        %v1000 = vshrl.u32 %v999, 7
        %v1001 = vsub.s32 %v998, %v1000
        %v1002 = vrot.slane %v988, %v1001
        %v1003 = vcombine.low %v970, %v986
        %v1005 = vunpack.c.l.s4 1934713408
        %v1006 = vunpack.c.0.s8 %v1005
        %v1007 = vlaneseq
        %v1008 = vshrl.u32 %v1007, 7
        %v1009 = vsub.s32 %v1006, %v1008
        %v1010 = vrot.slane %v1003, %v1009
        %v1011 = vcombine.high %v995, 0.0
        %v1012 = vcombine.high %v1002, 0.0
        %v1013 = vcombine.high %v1010, 0.0
        %1015 = vrot.lane.b32.xlu0 %v951, 14
        %v1016 = vpop.permute.xlu0 %1015
        %1019 = vrot.lane.b32.xlu0 %v934, 28
        %v1020 = vpop.permute.xlu0 %1019
        %1023 = vrot.lane.b32.xlu0 %v952, 42
        %v1024 = vpop.permute.xlu0 %1023
        %1027 = vrot.lane.b32.xlu0 %v943, 56
        %v1028 = vpop.permute.xlu0 %1027
        %1031 = vrot.lane.b32.xlu0 %v953, 70
        %v1032 = vpop.permute.xlu0 %1031
        %1035 = vrot.lane.b32.xlu0 %v950, 84
        %v1036 = vpop.permute.xlu0 %1035
        %1039 = vrot.lane.b32.xlu0 %v954, 98
        %v1040 = vpop.permute.xlu0 %1039
        %1043 = vrot.lane.b32.xlu0 %v995, 112
        %v1044 = vpop.permute.xlu0 %1043
        %1047 = vrot.lane.b32.xlu0 %v1011, 126
        %v1048 = vpop.permute.xlu0 %1047
        %1051 = vrot.lane.b32.xlu0 %v1002, 12
        %v1052 = vpop.permute.xlu0 %1051
        %1055 = vrot.lane.b32.xlu0 %v1012, 26
        %v1056 = vpop.permute.xlu0 %1055
        %1059 = vrot.lane.b32.xlu0 %v1010, 40
        %v1060 = vpop.permute.xlu0 %1059
        %1063 = vrot.lane.b32.xlu0 %v1013, 54
        %v1064 = vpop.permute.xlu0 %1063
        %v1066 = vsel %vm386, %v927, %v1016
        %v1067 = vsel %vm388, %v1066, %v1020
        %v1068 = vsel %vm390, %v1067, %v1024
        %v1069 = vsel %vm392, %v1068, %v1028
        %v1070 = vsel %vm394, %v1069, %v1032
        %v1071 = vsel %vm396, %v1070, %v1036
        %v1072 = vsel %vm398, %v1071, %v1040
        %v1073 = vsel %vm400, %v1072, %v1044
        %v1074 = vsel %vm402, %v1073, %v1048
        %v1075 = vsel %vm404, %v1048, %v1052
        %v1076 = vsel %vm406, %v1075, %v1056
        %v1077 = vsel %vm408, %v1076, %v1060
        %v1078 = vsel %vm410, %v1077, %v1064
        %v1081 = vrot.slane %v1074, 4
        %v1082 = vrot.slane %v1078, 4
        %1085 = vst [vmem:[#allocation2 + $0x10] sm:$0xf0] %v1081
        %1086 = vst.msk [vmem:[#allocation2 + $0x18] sm:$0xf0] %vm646, %v1082
        %1087 = vrot.lane.b32.xlu0 %v869, 127
        %v1088 = vpop.permute.xlu0 %1087
        %1089 = vrot.lane.b32.xlu0 %v868, 127
        %v1090 = vpop.permute.xlu0 %1089
        %1091 = vrot.lane.b32.xlu0 %v872, 127
        %v1092 = vpop.permute.xlu0 %1091
        %1093 = vrot.lane.b32.xlu0 %v871, 127
        %v1094 = vpop.permute.xlu0 %1093
        %1095 = vrot.lane.b32.xlu0 %v875, 127
        %v1096 = vpop.permute.xlu0 %1095
        %1097 = vrot.lane.b32.xlu0 %v874, 127
        %v1098 = vpop.permute.xlu0 %1097
        %1099 = vrot.lane.b32.xlu0 %v878, 127
        %v1100 = vpop.permute.xlu0 %1099
        %1101 = vrot.lane.b32.xlu0 %v877, 127
        %v1102 = vpop.permute.xlu0 %1101
        %v1111 = vcombine.low %v1088, %v1096
        %v1112 = vcombine.high %v1088, %v1096
        %v1114 = vunpack.c.l.s4 1983009808
        %v1115 = vunpack.c.0.s8 %v1114
        %v1116 = vlaneseq
        %v1117 = vshrl.u32 %v1116, 7
        %v1118 = vsub.s32 %v1115, %v1117
        %v1119 = vrot.slane %v1111, %v1118
        %v1121 = vunpack.c.l.s4 1983009808
        %v1122 = vunpack.c.0.s8 %v1121
        %v1123 = vlaneseq
        %v1124 = vshrl.u32 %v1123, 7
        %v1125 = vsub.s32 %v1122, %v1124
        %v1126 = vrot.slane %v1112, %v1125
        %v1127 = vcombine.low %v1092, %v1100
        %v1128 = vcombine.high %v1092, %v1100
        %v1130 = vunpack.c.l.s4 1983009808
        %v1131 = vunpack.c.0.s8 %v1130
        %v1132 = vlaneseq
        %v1133 = vshrl.u32 %v1132, 7
        %v1134 = vsub.s32 %v1131, %v1133
        %v1135 = vrot.slane %v1127, %v1134
        %v1137 = vunpack.c.l.s4 1983009808
        %v1138 = vunpack.c.0.s8 %v1137
        %v1139 = vlaneseq
        %v1140 = vshrl.u32 %v1139, 7
        %v1141 = vsub.s32 %v1138, %v1140
        %v1142 = vrot.slane %v1128, %v1141
        %v1143 = vcombine.low %v1119, %v1135
        %v1144 = vcombine.high %v1119, %v1135
        %v1146 = vunpack.c.l.s4 1934713408
        %v1147 = vunpack.c.0.s8 %v1146
        %v1148 = vlaneseq
        %v1149 = vshrl.u32 %v1148, 7
        %v1150 = vsub.s32 %v1147, %v1149
        %v1151 = vrot.slane %v1143, %v1150
        %v1153 = vunpack.c.l.s4 1934713408
        %v1154 = vunpack.c.0.s8 %v1153
        %v1155 = vlaneseq
        %v1156 = vshrl.u32 %v1155, 7
        %v1157 = vsub.s32 %v1154, %v1156
        %v1158 = vrot.slane %v1144, %v1157
        %v1159 = vcombine.low %v1126, %v1142
        %v1160 = vcombine.high %v1126, %v1142
        %v1162 = vunpack.c.l.s4 1934713408
        %v1163 = vunpack.c.0.s8 %v1162
        %v1164 = vlaneseq
        %v1165 = vshrl.u32 %v1164, 7
        %v1166 = vsub.s32 %v1163, %v1165
        %v1167 = vrot.slane %v1159, %v1166
        %v1169 = vunpack.c.l.s4 1934713408
        %v1170 = vunpack.c.0.s8 %v1169
        %v1171 = vlaneseq
        %v1172 = vshrl.u32 %v1171, 7
        %v1173 = vsub.s32 %v1170, %v1172
        %v1174 = vrot.slane %v1160, %v1173
        %v1175 = vcombine.high %v1151, 0.0
        %v1176 = vcombine.high %v1158, 0.0
        %v1177 = vcombine.high %v1167, 0.0
        %v1178 = vcombine.high %v1174, 0.0
        %v1179 = vcombine.low %v1090, %v1098
        %v1180 = vcombine.high %v1090, %v1098
        %v1182 = vunpack.c.l.s4 1983009808
        %v1183 = vunpack.c.0.s8 %v1182
        %v1184 = vlaneseq
        %v1185 = vshrl.u32 %v1184, 7
        %v1186 = vsub.s32 %v1183, %v1185
        %v1187 = vrot.slane %v1179, %v1186
        %v1189 = vunpack.c.l.s4 1983009808
        %v1190 = vunpack.c.0.s8 %v1189
        %v1191 = vlaneseq
        %v1192 = vshrl.u32 %v1191, 7
        %v1193 = vsub.s32 %v1190, %v1192
        %v1194 = vrot.slane %v1180, %v1193
        %v1195 = vcombine.low %v1094, %v1102
        %v1196 = vcombine.high %v1094, %v1102
        %v1198 = vunpack.c.l.s4 1983009808
        %v1199 = vunpack.c.0.s8 %v1198
        %v1200 = vlaneseq
        %v1201 = vshrl.u32 %v1200, 7
        %v1202 = vsub.s32 %v1199, %v1201
        %v1203 = vrot.slane %v1195, %v1202
        %v1205 = vunpack.c.l.s4 1983009808
        %v1206 = vunpack.c.0.s8 %v1205
        %v1207 = vlaneseq
        %v1208 = vshrl.u32 %v1207, 7
        %v1209 = vsub.s32 %v1206, %v1208
        %v1210 = vrot.slane %v1196, %v1209
        %v1211 = vcombine.low %v1187, %v1203
        %v1212 = vcombine.high %v1187, %v1203
        %v1214 = vunpack.c.l.s4 1934713408
        %v1215 = vunpack.c.0.s8 %v1214
        %v1216 = vlaneseq
        %v1217 = vshrl.u32 %v1216, 7
        %v1218 = vsub.s32 %v1215, %v1217
        %v1219 = vrot.slane %v1211, %v1218
        %v1221 = vunpack.c.l.s4 1934713408
        %v1222 = vunpack.c.0.s8 %v1221
        %v1223 = vlaneseq
        %v1224 = vshrl.u32 %v1223, 7
        %v1225 = vsub.s32 %v1222, %v1224
        %v1226 = vrot.slane %v1212, %v1225
        %v1227 = vcombine.low %v1194, %v1210
        %v1229 = vunpack.c.l.s4 1934713408
        %v1230 = vunpack.c.0.s8 %v1229
        %v1231 = vlaneseq
        %v1232 = vshrl.u32 %v1231, 7
        %v1233 = vsub.s32 %v1230, %v1232
        %v1234 = vrot.slane %v1227, %v1233
        %v1235 = vcombine.high %v1219, 0.0
        %v1236 = vcombine.high %v1226, 0.0
        %v1237 = vcombine.high %v1234, 0.0
        %1239 = vrot.lane.b32.xlu0 %v1175, 14
        %v1240 = vpop.permute.xlu0 %1239
        %1243 = vrot.lane.b32.xlu0 %v1158, 28
        %v1244 = vpop.permute.xlu0 %1243
        %1247 = vrot.lane.b32.xlu0 %v1176, 42
        %v1248 = vpop.permute.xlu0 %1247
        %1251 = vrot.lane.b32.xlu0 %v1167, 56
        %v1252 = vpop.permute.xlu0 %1251
        %1255 = vrot.lane.b32.xlu0 %v1177, 70
        %v1256 = vpop.permute.xlu0 %1255
        %1259 = vrot.lane.b32.xlu0 %v1174, 84
        %v1260 = vpop.permute.xlu0 %1259
        %1263 = vrot.lane.b32.xlu0 %v1178, 98
        %v1264 = vpop.permute.xlu0 %1263
        %1267 = vrot.lane.b32.xlu0 %v1219, 112
        %v1268 = vpop.permute.xlu0 %1267
        %1271 = vrot.lane.b32.xlu0 %v1235, 126
        %v1272 = vpop.permute.xlu0 %1271
        %1275 = vrot.lane.b32.xlu0 %v1226, 12
        %v1276 = vpop.permute.xlu0 %1275
        %1279 = vrot.lane.b32.xlu0 %v1236, 26
        %v1280 = vpop.permute.xlu0 %1279
        %1283 = vrot.lane.b32.xlu0 %v1234, 40
        %v1284 = vpop.permute.xlu0 %1283
        %1287 = vrot.lane.b32.xlu0 %v1237, 54
        %v1288 = vpop.permute.xlu0 %1287
        %v1290 = vsel %vm386, %v1151, %v1240
        %v1291 = vsel %vm388, %v1290, %v1244
        %v1292 = vsel %vm390, %v1291, %v1248
        %v1293 = vsel %vm392, %v1292, %v1252
        %v1294 = vsel %vm394, %v1293, %v1256
        %v1295 = vsel %vm396, %v1294, %v1260
        %v1296 = vsel %vm398, %v1295, %v1264
        %v1297 = vsel %vm400, %v1296, %v1268
        %v1298 = vsel %vm402, %v1297, %v1272
        %v1299 = vsel %vm404, %v1272, %v1276
        %v1300 = vsel %vm406, %v1299, %v1280
        %v1301 = vsel %vm408, %v1300, %v1284
        %v1302 = vsel %vm410, %v1301, %v1288
        %1303 = vst [vmem:[#allocation2 + $0x20] sm:$0xf] %v1298
        %1304 = vst.msk [vmem:[#allocation2 + $0x28] sm:$0xf] %vm413, %v1302
        %1305 = vrot.lane.b32.xlu0 %v869, 126
        %v1306 = vpop.permute.xlu0 %1305
        %1307 = vrot.lane.b32.xlu0 %v868, 126
        %v1308 = vpop.permute.xlu0 %1307
        %1309 = vrot.lane.b32.xlu0 %v872, 126
        %v1310 = vpop.permute.xlu0 %1309
        %1311 = vrot.lane.b32.xlu0 %v871, 126
        %v1312 = vpop.permute.xlu0 %1311
        %1313 = vrot.lane.b32.xlu0 %v875, 126
        %v1314 = vpop.permute.xlu0 %1313
        %1315 = vrot.lane.b32.xlu0 %v874, 126
        %v1316 = vpop.permute.xlu0 %1315
        %1317 = vrot.lane.b32.xlu0 %v878, 126
        %v1318 = vpop.permute.xlu0 %1317
        %1319 = vrot.lane.b32.xlu0 %v877, 126
        %v1320 = vpop.permute.xlu0 %1319
        %v1329 = vcombine.low %v1306, %v1314
        %v1330 = vcombine.high %v1306, %v1314
        %v1332 = vunpack.c.l.s4 1983009808
        %v1333 = vunpack.c.0.s8 %v1332
        %v1334 = vlaneseq
        %v1335 = vshrl.u32 %v1334, 7
        %v1336 = vsub.s32 %v1333, %v1335
        %v1337 = vrot.slane %v1329, %v1336
        %v1339 = vunpack.c.l.s4 1983009808
        %v1340 = vunpack.c.0.s8 %v1339
        %v1341 = vlaneseq
        %v1342 = vshrl.u32 %v1341, 7
        %v1343 = vsub.s32 %v1340, %v1342
        %v1344 = vrot.slane %v1330, %v1343
        %v1345 = vcombine.low %v1310, %v1318
        %v1346 = vcombine.high %v1310, %v1318
        %v1348 = vunpack.c.l.s4 1983009808
        %v1349 = vunpack.c.0.s8 %v1348
        %v1350 = vlaneseq
        %v1351 = vshrl.u32 %v1350, 7
        %v1352 = vsub.s32 %v1349, %v1351
        %v1353 = vrot.slane %v1345, %v1352
        %v1355 = vunpack.c.l.s4 1983009808
        %v1356 = vunpack.c.0.s8 %v1355
        %v1357 = vlaneseq
        %v1358 = vshrl.u32 %v1357, 7
        %v1359 = vsub.s32 %v1356, %v1358
        %v1360 = vrot.slane %v1346, %v1359
        %v1361 = vcombine.low %v1337, %v1353
        %v1362 = vcombine.high %v1337, %v1353
        %v1364 = vunpack.c.l.s4 1934713408
        %v1365 = vunpack.c.0.s8 %v1364
        %v1366 = vlaneseq
        %v1367 = vshrl.u32 %v1366, 7
        %v1368 = vsub.s32 %v1365, %v1367
        %v1369 = vrot.slane %v1361, %v1368
        %v1371 = vunpack.c.l.s4 1934713408
        %v1372 = vunpack.c.0.s8 %v1371
        %v1373 = vlaneseq
        %v1374 = vshrl.u32 %v1373, 7
        %v1375 = vsub.s32 %v1372, %v1374
        %v1376 = vrot.slane %v1362, %v1375
        %v1377 = vcombine.low %v1344, %v1360
        %v1378 = vcombine.high %v1344, %v1360
        %v1380 = vunpack.c.l.s4 1934713408
        %v1381 = vunpack.c.0.s8 %v1380
        %v1382 = vlaneseq
        %v1383 = vshrl.u32 %v1382, 7
        %v1384 = vsub.s32 %v1381, %v1383
        %v1385 = vrot.slane %v1377, %v1384
        %v1387 = vunpack.c.l.s4 1934713408
        %v1388 = vunpack.c.0.s8 %v1387
        %v1389 = vlaneseq
        %v1390 = vshrl.u32 %v1389, 7
        %v1391 = vsub.s32 %v1388, %v1390
        %v1392 = vrot.slane %v1378, %v1391
        %v1393 = vcombine.high %v1369, 0.0
        %v1394 = vcombine.high %v1376, 0.0
        %v1395 = vcombine.high %v1385, 0.0
        %v1396 = vcombine.high %v1392, 0.0
        %v1397 = vcombine.low %v1308, %v1316
        %v1398 = vcombine.high %v1308, %v1316
        %v1400 = vunpack.c.l.s4 1983009808
        %v1401 = vunpack.c.0.s8 %v1400
        %v1402 = vlaneseq
        %v1403 = vshrl.u32 %v1402, 7
        %v1404 = vsub.s32 %v1401, %v1403
        %v1405 = vrot.slane %v1397, %v1404
        %v1407 = vunpack.c.l.s4 1983009808
        %v1408 = vunpack.c.0.s8 %v1407
        %v1409 = vlaneseq
        %v1410 = vshrl.u32 %v1409, 7
        %v1411 = vsub.s32 %v1408, %v1410
        %v1412 = vrot.slane %v1398, %v1411
        %v1413 = vcombine.low %v1312, %v1320
        %v1414 = vcombine.high %v1312, %v1320
        %v1416 = vunpack.c.l.s4 1983009808
        %v1417 = vunpack.c.0.s8 %v1416
        %v1418 = vlaneseq
        %v1419 = vshrl.u32 %v1418, 7
        %v1420 = vsub.s32 %v1417, %v1419
        %v1421 = vrot.slane %v1413, %v1420
        %v1423 = vunpack.c.l.s4 1983009808
        %v1424 = vunpack.c.0.s8 %v1423
        %v1425 = vlaneseq
        %v1426 = vshrl.u32 %v1425, 7
        %v1427 = vsub.s32 %v1424, %v1426
        %v1428 = vrot.slane %v1414, %v1427
        %v1429 = vcombine.low %v1405, %v1421
        %v1430 = vcombine.high %v1405, %v1421
        %v1432 = vunpack.c.l.s4 1934713408
        %v1433 = vunpack.c.0.s8 %v1432
        %v1434 = vlaneseq
        %v1435 = vshrl.u32 %v1434, 7
        %v1436 = vsub.s32 %v1433, %v1435
        %v1437 = vrot.slane %v1429, %v1436
        %v1439 = vunpack.c.l.s4 1934713408
        %v1440 = vunpack.c.0.s8 %v1439
        %v1441 = vlaneseq
        %v1442 = vshrl.u32 %v1441, 7
        %v1443 = vsub.s32 %v1440, %v1442
        %v1444 = vrot.slane %v1430, %v1443
        %v1445 = vcombine.low %v1412, %v1428
        %v1447 = vunpack.c.l.s4 1934713408
        %v1448 = vunpack.c.0.s8 %v1447
        %v1449 = vlaneseq
        %v1450 = vshrl.u32 %v1449, 7
        %v1451 = vsub.s32 %v1448, %v1450
        %v1452 = vrot.slane %v1445, %v1451
        %v1453 = vcombine.high %v1437, 0.0
        %v1454 = vcombine.high %v1444, 0.0
        %v1455 = vcombine.high %v1452, 0.0
        %1457 = vrot.lane.b32.xlu0 %v1393, 14
        %v1458 = vpop.permute.xlu0 %1457
        %1461 = vrot.lane.b32.xlu0 %v1376, 28
        %v1462 = vpop.permute.xlu0 %1461
        %1465 = vrot.lane.b32.xlu0 %v1394, 42
        %v1466 = vpop.permute.xlu0 %1465
        %1469 = vrot.lane.b32.xlu0 %v1385, 56
        %v1470 = vpop.permute.xlu0 %1469
        %1473 = vrot.lane.b32.xlu0 %v1395, 70
        %v1474 = vpop.permute.xlu0 %1473
        %1477 = vrot.lane.b32.xlu0 %v1392, 84
        %v1478 = vpop.permute.xlu0 %1477
        %1481 = vrot.lane.b32.xlu0 %v1396, 98
        %v1482 = vpop.permute.xlu0 %1481
        %1485 = vrot.lane.b32.xlu0 %v1437, 112
        %v1486 = vpop.permute.xlu0 %1485
        %1489 = vrot.lane.b32.xlu0 %v1453, 126
        %v1490 = vpop.permute.xlu0 %1489
        %1493 = vrot.lane.b32.xlu0 %v1444, 12
        %v1494 = vpop.permute.xlu0 %1493
        %1497 = vrot.lane.b32.xlu0 %v1454, 26
        %v1498 = vpop.permute.xlu0 %1497
        %1501 = vrot.lane.b32.xlu0 %v1452, 40
        %v1502 = vpop.permute.xlu0 %1501
        %1505 = vrot.lane.b32.xlu0 %v1455, 54
        %v1506 = vpop.permute.xlu0 %1505
        %v1508 = vsel %vm386, %v1369, %v1458
        %v1509 = vsel %vm388, %v1508, %v1462
        %v1510 = vsel %vm390, %v1509, %v1466
        %v1511 = vsel %vm392, %v1510, %v1470
        %v1512 = vsel %vm394, %v1511, %v1474
        %v1513 = vsel %vm396, %v1512, %v1478
        %v1514 = vsel %vm398, %v1513, %v1482
        %v1515 = vsel %vm400, %v1514, %v1486
        %v1516 = vsel %vm402, %v1515, %v1490
        %v1517 = vsel %vm404, %v1490, %v1494
        %v1518 = vsel %vm406, %v1517, %v1498
        %v1519 = vsel %vm408, %v1518, %v1502
        %v1520 = vsel %vm410, %v1519, %v1506
        %v1523 = vrot.slane %v1516, 4
        %v1524 = vrot.slane %v1520, 4
        %1527 = vst [vmem:[#allocation2 + $0x20] sm:$0xf0] %v1523
        %1528 = vst.msk [vmem:[#allocation2 + $0x28] sm:$0xf0] %vm646, %v1524
        %vm1529 = vcmask 1045504
        %v1530 = vrot.slane %v199, 2
        %v1531 = vrot.slane %v200, 2
        %v1532 = vsel %vm1529, %v1530, %v1531
        %v1533 = vrot.slane %v201, 2
        %v1534 = vrot.slane %v202, 2
        %v1535 = vsel %vm1529, %v1533, %v1534
        %v1536 = vrot.slane %v203, 2
        %v1537 = vrot.slane %v204, 2
        %v1538 = vsel %vm1529, %v1536, %v1537
        %v1539 = vrot.slane %v205, 2
        %v1540 = vrot.slane %v206, 2
        %v1541 = vsel %vm1529, %v1539, %v1540
        %v1550 = vcombine.low %v1532, %v1538
        %v1551 = vcombine.high %v1532, %v1538
        %v1553 = vunpack.c.l.s4 1983009808
        %v1554 = vunpack.c.0.s8 %v1553
        %v1555 = vlaneseq
        %v1556 = vshrl.u32 %v1555, 7
        %v1557 = vsub.s32 %v1554, %v1556
        %v1558 = vrot.slane %v1550, %v1557
        %v1560 = vunpack.c.l.s4 1983009808
        %v1561 = vunpack.c.0.s8 %v1560
        %v1562 = vlaneseq
        %v1563 = vshrl.u32 %v1562, 7
        %v1564 = vsub.s32 %v1561, %v1563
        %v1565 = vrot.slane %v1551, %v1564
        %v1566 = vcombine.low %v1535, %v1541
        %v1567 = vcombine.high %v1535, %v1541
        %v1569 = vunpack.c.l.s4 1983009808
        %v1570 = vunpack.c.0.s8 %v1569
        %v1571 = vlaneseq
        %v1572 = vshrl.u32 %v1571, 7
        %v1573 = vsub.s32 %v1570, %v1572
        %v1574 = vrot.slane %v1566, %v1573
        %v1576 = vunpack.c.l.s4 1983009808
        %v1577 = vunpack.c.0.s8 %v1576
        %v1578 = vlaneseq
        %v1579 = vshrl.u32 %v1578, 7
        %v1580 = vsub.s32 %v1577, %v1579
        %v1581 = vrot.slane %v1567, %v1580
        %v1582 = vcombine.low %v1558, %v1574
        %v1583 = vcombine.high %v1558, %v1574
        %v1585 = vunpack.c.l.s4 1934713408
        %v1586 = vunpack.c.0.s8 %v1585
        %v1587 = vlaneseq
        %v1588 = vshrl.u32 %v1587, 7
        %v1589 = vsub.s32 %v1586, %v1588
        %v1590 = vrot.slane %v1582, %v1589
        %v1592 = vunpack.c.l.s4 1934713408
        %v1593 = vunpack.c.0.s8 %v1592
        %v1594 = vlaneseq
        %v1595 = vshrl.u32 %v1594, 7
        %v1596 = vsub.s32 %v1593, %v1595
        %v1597 = vrot.slane %v1583, %v1596
        %v1598 = vcombine.low %v1565, %v1581
        %v1599 = vcombine.high %v1565, %v1581
        %v1601 = vunpack.c.l.s4 1934713408
        %v1602 = vunpack.c.0.s8 %v1601
        %v1603 = vlaneseq
        %v1604 = vshrl.u32 %v1603, 7
        %v1605 = vsub.s32 %v1602, %v1604
        %v1606 = vrot.slane %v1598, %v1605
        %v1608 = vunpack.c.l.s4 1934713408
        %v1609 = vunpack.c.0.s8 %v1608
        %v1610 = vlaneseq
        %v1611 = vshrl.u32 %v1610, 7
        %v1612 = vsub.s32 %v1609, %v1611
        %v1613 = vrot.slane %v1599, %v1612
        %v1614 = vcombine.high %v1590, 0.0
        %v1615 = vcombine.high %v1597, 0.0
        %v1616 = vcombine.high %v1606, 0.0
        %v1617 = vcombine.high %v1613, 0.0
        %v1618 = vcombine.low %v1531, %v1537
        %v1619 = vcombine.high %v1531, %v1537
        %v1621 = vunpack.c.l.s4 1983009808
        %v1622 = vunpack.c.0.s8 %v1621
        %v1623 = vlaneseq
        %v1624 = vshrl.u32 %v1623, 7
        %v1625 = vsub.s32 %v1622, %v1624
        %v1626 = vrot.slane %v1618, %v1625
        %v1628 = vunpack.c.l.s4 1983009808
        %v1629 = vunpack.c.0.s8 %v1628
        %v1630 = vlaneseq
        %v1631 = vshrl.u32 %v1630, 7
        %v1632 = vsub.s32 %v1629, %v1631
        %v1633 = vrot.slane %v1619, %v1632
        %v1634 = vcombine.low %v1534, %v1540
        %v1635 = vcombine.high %v1534, %v1540
        %v1637 = vunpack.c.l.s4 1983009808
        %v1638 = vunpack.c.0.s8 %v1637
        %v1639 = vlaneseq
        %v1640 = vshrl.u32 %v1639, 7
        %v1641 = vsub.s32 %v1638, %v1640
        %v1642 = vrot.slane %v1634, %v1641
        %v1644 = vunpack.c.l.s4 1983009808
        %v1645 = vunpack.c.0.s8 %v1644
        %v1646 = vlaneseq
        %v1647 = vshrl.u32 %v1646, 7
        %v1648 = vsub.s32 %v1645, %v1647
        %v1649 = vrot.slane %v1635, %v1648
        %v1650 = vcombine.low %v1626, %v1642
        %v1651 = vcombine.high %v1626, %v1642
        %v1653 = vunpack.c.l.s4 1934713408
        %v1654 = vunpack.c.0.s8 %v1653
        %v1655 = vlaneseq
        %v1656 = vshrl.u32 %v1655, 7
        %v1657 = vsub.s32 %v1654, %v1656
        %v1658 = vrot.slane %v1650, %v1657
        %v1660 = vunpack.c.l.s4 1934713408
        %v1661 = vunpack.c.0.s8 %v1660
        %v1662 = vlaneseq
        %v1663 = vshrl.u32 %v1662, 7
        %v1664 = vsub.s32 %v1661, %v1663
        %v1665 = vrot.slane %v1651, %v1664
        %v1666 = vcombine.low %v1633, %v1649
        %v1668 = vunpack.c.l.s4 1934713408
        %v1669 = vunpack.c.0.s8 %v1668
        %v1670 = vlaneseq
        %v1671 = vshrl.u32 %v1670, 7
        %v1672 = vsub.s32 %v1669, %v1671
        %v1673 = vrot.slane %v1666, %v1672
        %v1674 = vcombine.high %v1658, 0.0
        %v1675 = vcombine.high %v1665, 0.0
        %v1676 = vcombine.high %v1673, 0.0
        %1678 = vrot.lane.b32.xlu0 %v1614, 14
        %v1679 = vpop.permute.xlu0 %1678
        %1682 = vrot.lane.b32.xlu0 %v1597, 28
        %v1683 = vpop.permute.xlu0 %1682
        %1686 = vrot.lane.b32.xlu0 %v1615, 42
        %v1687 = vpop.permute.xlu0 %1686
        %1690 = vrot.lane.b32.xlu0 %v1606, 56
        %v1691 = vpop.permute.xlu0 %1690
        %1694 = vrot.lane.b32.xlu0 %v1616, 70
        %v1695 = vpop.permute.xlu0 %1694
        %1698 = vrot.lane.b32.xlu0 %v1613, 84
        %v1699 = vpop.permute.xlu0 %1698
        %1702 = vrot.lane.b32.xlu0 %v1617, 98
        %v1703 = vpop.permute.xlu0 %1702
        %1706 = vrot.lane.b32.xlu0 %v1658, 112
        %v1707 = vpop.permute.xlu0 %1706
        %1710 = vrot.lane.b32.xlu0 %v1674, 126
        %v1711 = vpop.permute.xlu0 %1710
        %1714 = vrot.lane.b32.xlu0 %v1665, 12
        %v1715 = vpop.permute.xlu0 %1714
        %1718 = vrot.lane.b32.xlu0 %v1675, 26
        %v1719 = vpop.permute.xlu0 %1718
        %1722 = vrot.lane.b32.xlu0 %v1673, 40
        %v1723 = vpop.permute.xlu0 %1722
        %1726 = vrot.lane.b32.xlu0 %v1676, 54
        %v1727 = vpop.permute.xlu0 %1726
        %v1729 = vsel %vm386, %v1590, %v1679
        %v1730 = vsel %vm388, %v1729, %v1683
        %v1731 = vsel %vm390, %v1730, %v1687
        %v1732 = vsel %vm392, %v1731, %v1691
        %v1733 = vsel %vm394, %v1732, %v1695
        %v1734 = vsel %vm396, %v1733, %v1699
        %v1735 = vsel %vm398, %v1734, %v1703
        %v1736 = vsel %vm400, %v1735, %v1707
        %v1737 = vsel %vm402, %v1736, %v1711
        %v1738 = vsel %vm404, %v1711, %v1715
        %v1739 = vsel %vm406, %v1738, %v1719
        %v1740 = vsel %vm408, %v1739, %v1723
        %v1741 = vsel %vm410, %v1740, %v1727
        %1742 = vst [vmem:[#allocation2 + $0x30] sm:$0xf] %v1737
        %1743 = vst.msk [vmem:[#allocation2 + $0x38] sm:$0xf] %vm413, %v1741
        %1744 = vrot.lane.b32.xlu0 %v1532, 127
        %v1745 = vpop.permute.xlu0 %1744
        %1746 = vrot.lane.b32.xlu0 %v1531, 127
        %v1747 = vpop.permute.xlu0 %1746
        %1748 = vrot.lane.b32.xlu0 %v1535, 127
        %v1749 = vpop.permute.xlu0 %1748
        %1750 = vrot.lane.b32.xlu0 %v1534, 127
        %v1751 = vpop.permute.xlu0 %1750
        %1752 = vrot.lane.b32.xlu0 %v1538, 127
        %v1753 = vpop.permute.xlu0 %1752
        %1754 = vrot.lane.b32.xlu0 %v1537, 127
        %v1755 = vpop.permute.xlu0 %1754
        %1756 = vrot.lane.b32.xlu0 %v1541, 127
        %v1757 = vpop.permute.xlu0 %1756
        %1758 = vrot.lane.b32.xlu0 %v1540, 127
        %v1759 = vpop.permute.xlu0 %1758
        %v1768 = vcombine.low %v1745, %v1753
        %v1769 = vcombine.high %v1745, %v1753
        %v1771 = vunpack.c.l.s4 1983009808
        %v1772 = vunpack.c.0.s8 %v1771
        %v1773 = vlaneseq
        %v1774 = vshrl.u32 %v1773, 7
        %v1775 = vsub.s32 %v1772, %v1774
        %v1776 = vrot.slane %v1768, %v1775
        %v1778 = vunpack.c.l.s4 1983009808
        %v1779 = vunpack.c.0.s8 %v1778
        %v1780 = vlaneseq
        %v1781 = vshrl.u32 %v1780, 7
        %v1782 = vsub.s32 %v1779, %v1781
        %v1783 = vrot.slane %v1769, %v1782
        %v1784 = vcombine.low %v1749, %v1757
        %v1785 = vcombine.high %v1749, %v1757
        %v1787 = vunpack.c.l.s4 1983009808
        %v1788 = vunpack.c.0.s8 %v1787
        %v1789 = vlaneseq
        %v1790 = vshrl.u32 %v1789, 7
        %v1791 = vsub.s32 %v1788, %v1790
        %v1792 = vrot.slane %v1784, %v1791
        %v1794 = vunpack.c.l.s4 1983009808
        %v1795 = vunpack.c.0.s8 %v1794
        %v1796 = vlaneseq
        %v1797 = vshrl.u32 %v1796, 7
        %v1798 = vsub.s32 %v1795, %v1797
        %v1799 = vrot.slane %v1785, %v1798
        %v1800 = vcombine.low %v1776, %v1792
        %v1801 = vcombine.high %v1776, %v1792
        %v1803 = vunpack.c.l.s4 1934713408
        %v1804 = vunpack.c.0.s8 %v1803
        %v1805 = vlaneseq
        %v1806 = vshrl.u32 %v1805, 7
        %v1807 = vsub.s32 %v1804, %v1806
        %v1808 = vrot.slane %v1800, %v1807
        %v1810 = vunpack.c.l.s4 1934713408
        %v1811 = vunpack.c.0.s8 %v1810
        %v1812 = vlaneseq
        %v1813 = vshrl.u32 %v1812, 7
        %v1814 = vsub.s32 %v1811, %v1813
        %v1815 = vrot.slane %v1801, %v1814
        %v1816 = vcombine.low %v1783, %v1799
        %v1817 = vcombine.high %v1783, %v1799
        %v1819 = vunpack.c.l.s4 1934713408
        %v1820 = vunpack.c.0.s8 %v1819
        %v1821 = vlaneseq
        %v1822 = vshrl.u32 %v1821, 7
        %v1823 = vsub.s32 %v1820, %v1822
        %v1824 = vrot.slane %v1816, %v1823
        %v1826 = vunpack.c.l.s4 1934713408
        %v1827 = vunpack.c.0.s8 %v1826
        %v1828 = vlaneseq
        %v1829 = vshrl.u32 %v1828, 7
        %v1830 = vsub.s32 %v1827, %v1829
        %v1831 = vrot.slane %v1817, %v1830
        %v1832 = vcombine.high %v1808, 0.0
        %v1833 = vcombine.high %v1815, 0.0
        %v1834 = vcombine.high %v1824, 0.0
        %v1835 = vcombine.high %v1831, 0.0
        %v1836 = vcombine.low %v1747, %v1755
        %v1837 = vcombine.high %v1747, %v1755
        %v1839 = vunpack.c.l.s4 1983009808
        %v1840 = vunpack.c.0.s8 %v1839
        %v1841 = vlaneseq
        %v1842 = vshrl.u32 %v1841, 7
        %v1843 = vsub.s32 %v1840, %v1842
        %v1844 = vrot.slane %v1836, %v1843
        %v1846 = vunpack.c.l.s4 1983009808
        %v1847 = vunpack.c.0.s8 %v1846
        %v1848 = vlaneseq
        %v1849 = vshrl.u32 %v1848, 7
        %v1850 = vsub.s32 %v1847, %v1849
        %v1851 = vrot.slane %v1837, %v1850
        %v1852 = vcombine.low %v1751, %v1759
        %v1853 = vcombine.high %v1751, %v1759
        %v1855 = vunpack.c.l.s4 1983009808
        %v1856 = vunpack.c.0.s8 %v1855
        %v1857 = vlaneseq
        %v1858 = vshrl.u32 %v1857, 7
        %v1859 = vsub.s32 %v1856, %v1858
        %v1860 = vrot.slane %v1852, %v1859
        %v1862 = vunpack.c.l.s4 1983009808
        %v1863 = vunpack.c.0.s8 %v1862
        %v1864 = vlaneseq
        %v1865 = vshrl.u32 %v1864, 7
        %v1866 = vsub.s32 %v1863, %v1865
        %v1867 = vrot.slane %v1853, %v1866
        %v1868 = vcombine.low %v1844, %v1860
        %v1869 = vcombine.high %v1844, %v1860
        %v1871 = vunpack.c.l.s4 1934713408
        %v1872 = vunpack.c.0.s8 %v1871
        %v1873 = vlaneseq
        %v1874 = vshrl.u32 %v1873, 7
        %v1875 = vsub.s32 %v1872, %v1874
        %v1876 = vrot.slane %v1868, %v1875
        %v1878 = vunpack.c.l.s4 1934713408
        %v1879 = vunpack.c.0.s8 %v1878
        %v1880 = vlaneseq
        %v1881 = vshrl.u32 %v1880, 7
        %v1882 = vsub.s32 %v1879, %v1881
        %v1883 = vrot.slane %v1869, %v1882
        %v1884 = vcombine.low %v1851, %v1867
        %v1886 = vunpack.c.l.s4 1934713408
        %v1887 = vunpack.c.0.s8 %v1886
        %v1888 = vlaneseq
        %v1889 = vshrl.u32 %v1888, 7
        %v1890 = vsub.s32 %v1887, %v1889
        %v1891 = vrot.slane %v1884, %v1890
        %v1892 = vcombine.high %v1876, 0.0
        %v1893 = vcombine.high %v1883, 0.0
        %v1894 = vcombine.high %v1891, 0.0
        %1896 = vrot.lane.b32.xlu0 %v1832, 14
        %v1897 = vpop.permute.xlu0 %1896
        %1900 = vrot.lane.b32.xlu0 %v1815, 28
        %v1901 = vpop.permute.xlu0 %1900
        %1904 = vrot.lane.b32.xlu0 %v1833, 42
        %v1905 = vpop.permute.xlu0 %1904
        %1908 = vrot.lane.b32.xlu0 %v1824, 56
        %v1909 = vpop.permute.xlu0 %1908
        %1912 = vrot.lane.b32.xlu0 %v1834, 70
        %v1913 = vpop.permute.xlu0 %1912
        %1916 = vrot.lane.b32.xlu0 %v1831, 84
        %v1917 = vpop.permute.xlu0 %1916
        %1920 = vrot.lane.b32.xlu0 %v1835, 98
        %v1921 = vpop.permute.xlu0 %1920
        %1924 = vrot.lane.b32.xlu0 %v1876, 112
        %v1925 = vpop.permute.xlu0 %1924
        %1928 = vrot.lane.b32.xlu0 %v1892, 126
        %v1929 = vpop.permute.xlu0 %1928
        %1932 = vrot.lane.b32.xlu0 %v1883, 12
        %v1933 = vpop.permute.xlu0 %1932
        %1936 = vrot.lane.b32.xlu0 %v1893, 26
        %v1937 = vpop.permute.xlu0 %1936
        %1940 = vrot.lane.b32.xlu0 %v1891, 40
        %v1941 = vpop.permute.xlu0 %1940
        %1944 = vrot.lane.b32.xlu0 %v1894, 54
        %v1945 = vpop.permute.xlu0 %1944
        %v1947 = vsel %vm386, %v1808, %v1897
        %v1948 = vsel %vm388, %v1947, %v1901
        %v1949 = vsel %vm390, %v1948, %v1905
        %v1950 = vsel %vm392, %v1949, %v1909
        %v1951 = vsel %vm394, %v1950, %v1913
        %v1952 = vsel %vm396, %v1951, %v1917
        %v1953 = vsel %vm398, %v1952, %v1921
        %v1954 = vsel %vm400, %v1953, %v1925
        %v1955 = vsel %vm402, %v1954, %v1929
        %v1956 = vsel %vm404, %v1929, %v1933
        %v1957 = vsel %vm406, %v1956, %v1937
        %v1958 = vsel %vm408, %v1957, %v1941
        %v1959 = vsel %vm410, %v1958, %v1945
        %v1962 = vrot.slane %v1955, 4
        %v1963 = vrot.slane %v1959, 4
        %1966 = vst [vmem:[#allocation2 + $0x30] sm:$0xf0] %v1962
        %1967 = vst.msk [vmem:[#allocation2 + $0x38] sm:$0xf0] %vm646, %v1963
        %1968 = vrot.lane.b32.xlu0 %v1532, 126
        %v1969 = vpop.permute.xlu0 %1968
        %1970 = vrot.lane.b32.xlu0 %v1531, 126
        %v1971 = vpop.permute.xlu0 %1970
        %1972 = vrot.lane.b32.xlu0 %v1535, 126
        %v1973 = vpop.permute.xlu0 %1972
        %1974 = vrot.lane.b32.xlu0 %v1534, 126
        %v1975 = vpop.permute.xlu0 %1974
        %1976 = vrot.lane.b32.xlu0 %v1538, 126
        %v1977 = vpop.permute.xlu0 %1976
        %1978 = vrot.lane.b32.xlu0 %v1537, 126
        %v1979 = vpop.permute.xlu0 %1978
        %1980 = vrot.lane.b32.xlu0 %v1541, 126
        %v1981 = vpop.permute.xlu0 %1980
        %1982 = vrot.lane.b32.xlu0 %v1540, 126
        %v1983 = vpop.permute.xlu0 %1982
        %v1992 = vcombine.low %v1969, %v1977
        %v1993 = vcombine.high %v1969, %v1977
        %v1995 = vunpack.c.l.s4 1983009808
        %v1996 = vunpack.c.0.s8 %v1995
        %v1997 = vlaneseq
        %v1998 = vshrl.u32 %v1997, 7
        %v1999 = vsub.s32 %v1996, %v1998
        %v2000 = vrot.slane %v1992, %v1999
        %v2002 = vunpack.c.l.s4 1983009808
        %v2003 = vunpack.c.0.s8 %v2002
        %v2004 = vlaneseq
        %v2005 = vshrl.u32 %v2004, 7
        %v2006 = vsub.s32 %v2003, %v2005
        %v2007 = vrot.slane %v1993, %v2006
        %v2008 = vcombine.low %v1973, %v1981
        %v2009 = vcombine.high %v1973, %v1981
        %v2011 = vunpack.c.l.s4 1983009808
        %v2012 = vunpack.c.0.s8 %v2011
        %v2013 = vlaneseq
        %v2014 = vshrl.u32 %v2013, 7
        %v2015 = vsub.s32 %v2012, %v2014
        %v2016 = vrot.slane %v2008, %v2015
        %v2018 = vunpack.c.l.s4 1983009808
        %v2019 = vunpack.c.0.s8 %v2018
        %v2020 = vlaneseq
        %v2021 = vshrl.u32 %v2020, 7
        %v2022 = vsub.s32 %v2019, %v2021
        %v2023 = vrot.slane %v2009, %v2022
        %v2024 = vcombine.low %v2000, %v2016
        %v2025 = vcombine.high %v2000, %v2016
        %v2027 = vunpack.c.l.s4 1934713408
        %v2028 = vunpack.c.0.s8 %v2027
        %v2029 = vlaneseq
        %v2030 = vshrl.u32 %v2029, 7
        %v2031 = vsub.s32 %v2028, %v2030
        %v2032 = vrot.slane %v2024, %v2031
        %v2034 = vunpack.c.l.s4 1934713408
        %v2035 = vunpack.c.0.s8 %v2034
        %v2036 = vlaneseq
        %v2037 = vshrl.u32 %v2036, 7
        %v2038 = vsub.s32 %v2035, %v2037
        %v2039 = vrot.slane %v2025, %v2038
        %v2040 = vcombine.low %v2007, %v2023
        %v2041 = vcombine.high %v2007, %v2023
        %v2043 = vunpack.c.l.s4 1934713408
        %v2044 = vunpack.c.0.s8 %v2043
        %v2045 = vlaneseq
        %v2046 = vshrl.u32 %v2045, 7
        %v2047 = vsub.s32 %v2044, %v2046
        %v2048 = vrot.slane %v2040, %v2047
        %v2050 = vunpack.c.l.s4 1934713408
        %v2051 = vunpack.c.0.s8 %v2050
        %v2052 = vlaneseq
        %v2053 = vshrl.u32 %v2052, 7
        %v2054 = vsub.s32 %v2051, %v2053
        %v2055 = vrot.slane %v2041, %v2054
        %v2056 = vcombine.high %v2032, 0.0
        %v2057 = vcombine.high %v2039, 0.0
        %v2058 = vcombine.high %v2048, 0.0
        %v2059 = vcombine.high %v2055, 0.0
        %v2060 = vcombine.low %v1971, %v1979
        %v2061 = vcombine.high %v1971, %v1979
        %v2063 = vunpack.c.l.s4 1983009808
        %v2064 = vunpack.c.0.s8 %v2063
        %v2065 = vlaneseq
        %v2066 = vshrl.u32 %v2065, 7
        %v2067 = vsub.s32 %v2064, %v2066
        %v2068 = vrot.slane %v2060, %v2067
        %v2070 = vunpack.c.l.s4 1983009808
        %v2071 = vunpack.c.0.s8 %v2070
        %v2072 = vlaneseq
        %v2073 = vshrl.u32 %v2072, 7
        %v2074 = vsub.s32 %v2071, %v2073
        %v2075 = vrot.slane %v2061, %v2074
        %v2076 = vcombine.low %v1975, %v1983
        %v2077 = vcombine.high %v1975, %v1983
        %v2079 = vunpack.c.l.s4 1983009808
        %v2080 = vunpack.c.0.s8 %v2079
        %v2081 = vlaneseq
        %v2082 = vshrl.u32 %v2081, 7
        %v2083 = vsub.s32 %v2080, %v2082
        %v2084 = vrot.slane %v2076, %v2083
        %v2086 = vunpack.c.l.s4 1983009808
        %v2087 = vunpack.c.0.s8 %v2086
        %v2088 = vlaneseq
        %v2089 = vshrl.u32 %v2088, 7
        %v2090 = vsub.s32 %v2087, %v2089
        %v2091 = vrot.slane %v2077, %v2090
        %v2092 = vcombine.low %v2068, %v2084
        %v2093 = vcombine.high %v2068, %v2084
        %v2095 = vunpack.c.l.s4 1934713408
        %v2096 = vunpack.c.0.s8 %v2095
        %v2097 = vlaneseq
        %v2098 = vshrl.u32 %v2097, 7
        %v2099 = vsub.s32 %v2096, %v2098
        %v2100 = vrot.slane %v2092, %v2099
        %v2102 = vunpack.c.l.s4 1934713408
        %v2103 = vunpack.c.0.s8 %v2102
        %v2104 = vlaneseq
        %v2105 = vshrl.u32 %v2104, 7
        %v2106 = vsub.s32 %v2103, %v2105
        %v2107 = vrot.slane %v2093, %v2106
        %v2108 = vcombine.low %v2075, %v2091
        %v2110 = vunpack.c.l.s4 1934713408
        %v2111 = vunpack.c.0.s8 %v2110
        %v2112 = vlaneseq
        %v2113 = vshrl.u32 %v2112, 7
        %v2114 = vsub.s32 %v2111, %v2113
        %v2115 = vrot.slane %v2108, %v2114
        %v2116 = vcombine.high %v2100, 0.0
        %v2117 = vcombine.high %v2107, 0.0
        %v2118 = vcombine.high %v2115, 0.0
        %2120 = vrot.lane.b32.xlu0 %v2056, 14
        %v2121 = vpop.permute.xlu0 %2120
        %2124 = vrot.lane.b32.xlu0 %v2039, 28
        %v2125 = vpop.permute.xlu0 %2124
        %2128 = vrot.lane.b32.xlu0 %v2057, 42
        %v2129 = vpop.permute.xlu0 %2128
        %2132 = vrot.lane.b32.xlu0 %v2048, 56
        %v2133 = vpop.permute.xlu0 %2132
        %2136 = vrot.lane.b32.xlu0 %v2058, 70
        %v2137 = vpop.permute.xlu0 %2136
        %2140 = vrot.lane.b32.xlu0 %v2055, 84
        %v2141 = vpop.permute.xlu0 %2140
        %2144 = vrot.lane.b32.xlu0 %v2059, 98
        %v2145 = vpop.permute.xlu0 %2144
        %2148 = vrot.lane.b32.xlu0 %v2100, 112
        %v2149 = vpop.permute.xlu0 %2148
        %2152 = vrot.lane.b32.xlu0 %v2116, 126
        %v2153 = vpop.permute.xlu0 %2152
        %2156 = vrot.lane.b32.xlu0 %v2107, 12
        %v2157 = vpop.permute.xlu0 %2156
        %2160 = vrot.lane.b32.xlu0 %v2117, 26
        %v2161 = vpop.permute.xlu0 %2160
        %2164 = vrot.lane.b32.xlu0 %v2115, 40
        %v2165 = vpop.permute.xlu0 %2164
        %2168 = vrot.lane.b32.xlu0 %v2118, 54
        %v2169 = vpop.permute.xlu0 %2168
        %v2171 = vsel %vm386, %v2032, %v2121
        %v2172 = vsel %vm388, %v2171, %v2125
        %v2173 = vsel %vm390, %v2172, %v2129
        %v2174 = vsel %vm392, %v2173, %v2133
        %v2175 = vsel %vm394, %v2174, %v2137
        %v2176 = vsel %vm396, %v2175, %v2141
        %v2177 = vsel %vm398, %v2176, %v2145
        %v2178 = vsel %vm400, %v2177, %v2149
        %v2179 = vsel %vm402, %v2178, %v2153
        %v2180 = vsel %vm404, %v2153, %v2157
        %v2181 = vsel %vm406, %v2180, %v2161
        %v2182 = vsel %vm408, %v2181, %v2165
        %v2183 = vsel %vm410, %v2182, %v2169
        %2184 = vst [vmem:[#allocation2 + $0x40] sm:$0xf] %v2179
        %2185 = vst.msk [vmem:[#allocation2 + $0x48] sm:$0xf] %vm413, %v2183
        %v2186 = vld [vmem:[%s173] sm:$0x3]
        %v2187 = vld [vmem:[#allocation2] sm:$0xff]
        %v2188 = vld [vmem:[#allocation2 + $0x8] sm:$0xff]
        %v2189 = vld [vmem:[#allocation2 + $0x10] sm:$0xff]
        %v2190 = vld [vmem:[#allocation2 + $0x18] sm:$0xff]
        %v2191 = vld [vmem:[#allocation2 + $0x20] sm:$0xff]
        %v2192 = vld [vmem:[#allocation2 + $0x28] sm:$0xff]
        %v2193 = vld [vmem:[#allocation2 + $0x30] sm:$0xff]
        %v2194 = vld [vmem:[#allocation2 + $0x38] sm:$0xff]
        %v2195 = vld [vmem:[#allocation2 + $0x40] sm:$0xf]
        %v2196 = vld [vmem:[#allocation2 + $0x48] sm:$0xf]
        %vm2197 = vcmask 293888
        %v2199 = vsel %vm2197, %v2186, 0
        %vm2201 = vcmask 1043456
        %v2203 = vsel %vm2201, %v2195, 0
        %v2206 = vsel %vm2201, %v2196, 0
        %2208 = vmatprep.subr.mxu0 0.0
        %2209 = vmatpush1.msra.mxu0 0.0
        %2210 = vmatprep.subr.mxu0 0.0
        %2211 = vmatpush1.msra.mxu0 0.0
        %2212 = vmatprep.subr.mxu0 0.0
        %2213 = vmatpush1.msra.mxu0 0.0
        %2214 = vmatprep.subr.mxu0 0.0
        %2215 = vmatpush1.msra.mxu0 0.0
        %2216 = vmatprep.subr.mxu0 0.0
        %2217 = vmatpush1.msra.mxu0 0.0
        %2218 = vmatprep.subr.mxu0 0.0
        %2219 = vmatpush1.msra.mxu0 0.0
        %2220 = vmatprep.subr.mxu0 0.0
        %2221 = vmatpush1.msra.mxu0 0.0
        %2222 = vmatprep.subr.mxu0 0.0
        %2223 = vmatpush1.msra.mxu0 0.0
        %2224 = vmatprep.subr.mxu0 0.0
        %2225 = vmatpush1.msra.mxu0 0.0
        %2226 = vmatprep.subr.mxu0 0.0
        %2227 = vmatpush1.msra.mxu0 0.0
        %2228 = vmatprep.subr.mxu0 0.0
        %2229 = vmatpush1.msra.mxu0 0.0
        %2230 = vmatprep.subr.mxu0 %v2206
        %2231 = vmatpush1.msra.mxu0 %v2203
        %2232 = vmatprep.subr.mxu0 %v2194
        %2233 = vmatpush1.msra.mxu0 %v2193
        %2234 = vmatprep.subr.mxu0 %v2192
        %2235 = vmatpush1.msra.mxu0 %v2191
        %2236 = vmatprep.subr.mxu0 %v2190
        %2237 = vmatpush1.msra.mxu0 %v2189
        %2238 = vmatprep.subr.mxu0 %v2188
        %2239 = vmatpush1.msra.mxu0 %v2187
        %2240 = vmatprep.subr.mxu0 0.0
        %2241 = vmatpush2.msra.mxu0 0.0
        %2242 = vmatprep.subr.mxu0 0.0
        %2243 = vmatpush2.msra.mxu0 0.0
        %2244 = vmatprep.subr.mxu0 0.0
        %2245 = vmatpush2.msra.mxu0 0.0
        %2246 = vmatprep.subr.mxu0 0.0
        %2247 = vmatpush2.msra.mxu0 0.0
        %2248 = vmatprep.subr.mxu0 0.0
        %2249 = vmatpush2.msra.mxu0 0.0
        %2250 = vmatprep.subr.mxu0 0.0
        %2251 = vmatpush2.msra.mxu0 0.0
        %2252 = vmatprep.subr.mxu0 0.0
        %2253 = vmatpush2.msra.mxu0 0.0
        %2254 = vmatprep.subr.mxu0 0.0
        %2255 = vmatpush2.msra.mxu0 0.0
        %2256 = vmatprep.subr.mxu0 0.0
        %2257 = vmatpush2.msra.mxu0 0.0
        %2258 = vmatprep.subr.mxu0 0.0
        %2259 = vmatpush2.msra.mxu0 0.0
        %2260 = vmatprep.subr.mxu0 0.0
        %2261 = vmatpush2.msra.mxu0 0.0
        %2262 = vmatprep.subr.mxu0 0.0
        %2263 = vmatpush2.msra.mxu0 0.0
        %2264 = vmatprep.subr.mxu0 0.0
        %2265 = vmatpush2.msra.mxu0 0.0
        %2266 = vmatprep.subr.mxu0 0.0
        %2267 = vmatpush2.msra.mxu0 0.0
        %2268 = vmatprep.subr.mxu0 0.0
        %2269 = vmatpush2.msra.mxu0 0.0
        %2270 = vmatprep.subr.mxu0 0.0
        %2271 = vmatpush2.msra.mxu0 0.0
        %2272 = vmatprep.mubr.f32.mxu0 0.0
        %2273 = vmatmul.mubr.f32.gmra.mxu0 %v2199
        %v2274 = vpop.f32.mrf.mxu0
        %v2275 = vadd.f32 0.0, %v2274
        %v2276 = vpop.f32.mrf.mxu0
        %v2277 = vadd.f32 0.0, %v2276
        %2278 = vdwg.mxu0
        %v2281 = vcombine.low %v2275, %v2277
        %v2283 = vunpack.c.l.s4 1983009808
        %v2284 = vunpack.c.0.s8 %v2283
        %v2285 = vlaneseq
        %v2286 = vshrl.u32 %v2285, 7
        %v2287 = vsub.s32 %v2284, %v2286
        %v2288 = vrot.slane %v2281, %v2287
        %vm2290 = vcmask 1041408
        %vm2291 = vcmask 551938
        %vm2292 = vmor %vm2291, %vm2290
        %2293 = vst.msk [vmem:[%s198] sm:$0xf] %vm2292, %v2288
        %s2294 = sand.u32 %s82, 1
        %s2295 = scalar_lea.sflag [#allocation5], %s2294
        %s2296 = sand.u32 %s82, 1
        %s2297 = smul.addr %s2296, 4
        %s2298 = scalar_lea.vmem [#allocation8], %s2297
        // Predicated region
        $region37: #{tpu_custom_call.1} parent=27 // pred_check
          %p2299 = pneg %p92
        $region38: #{tpu_custom_call.1} parent=27 // pred_check_branch
          %2301 = sbr.rel (%p2299) target = $region40
        $region39: #{tpu_custom_call.1} parent=27 // pred_region
          %s2303 = ssub.s32 64, 64
          %2304 = vsyncadd %s2295, %s2303
          %s2305 = smul.addr %s22, 2
          %s2306 = smul.addr %s2305, 32
          %s2307 = scalar_lea.hbm %s2, %s2306
          %s2309 = sshll.u32 %s2298, 4
          %s2310 = int_to_ptr.vmem [resolvable:$true] %s2309
          %2312 = dma.vmem_to_hbm [thread:$0]  %s2310, 64, %s2307, %s2295
        $region40: #{tpu_custom_call.1} parent=27 // pred_fallthru
          _
      $region28: #{tpu_custom_call.1} parent=5 // pred_fallthru
        _
      %p2313 = scmp.le.s32.totalorder 2, %s17
      // Predicated region
      $region41: #{tpu_custom_call.1} parent=5 // pred_check
        %p2314 = pneg %p2313
      $region42: #{tpu_custom_call.1} parent=5 // pred_check_branch
        %2316 = sbr.rel (%p2314) target = $region44
      $region43: #{tpu_custom_call.1} parent=5 // pred_region
        %s2317 = ssub.s32 %s17, 2
        // Predicated region
        $region45: #{tpu_custom_call.1} parent=43 // pred_check
          %p2318 = pneg %p98
        $region46: #{tpu_custom_call.1} parent=43 // pred_check_branch
          %2320 = sbr.rel (%p2318) target = $region48
        $region47: #{tpu_custom_call.1} parent=43 // pred_region
          %s2321 = sand.u32 %s83, 1
          %s2322 = scalar_lea.sflag [#allocation5], %s2321
          %s2323 = sand.u32 %s83, 1
          %s2324 = smul.addr %s2323, 4
          %s2325 = scalar_lea.vmem [#allocation8], %s2324
          %2326 = dma.done %s2322, 64
        $region48: #{tpu_custom_call.1} parent=43 // pred_fallthru
          _
      $region44: #{tpu_custom_call.1} parent=5 // pred_fallthru
        _
    $region6: #{tpu_custom_call.1} parent=1 // loop_footer
      %s21 = sadd.s32 1, %s17
    $region7: #{tpu_custom_call.1} parent=1 // loop_footer_branch
      %16 = sbr.rel target = $region3
    $region8: #{tpu_custom_call.1} parent=1 // loop_exit
      _
    %2327 = vsyncpa [#allocation4], 1
    %s2328 = scalar_lea.sflag [#allocation4], 1
    %2329 = vsyncpa %s2328, 1
    %2330 = vsyncpa [#allocation7], 1
    %s2331 = scalar_lea.sflag [#allocation7], 1
    %2332 = vsyncpa %s2331, 1
    %2333 = vsyncpa [#allocation5], 1
    %s2334 = scalar_lea.sflag [#allocation5], 1
    %2335 = vsyncpa %s2334, 1

</llo_original>
